<compile_context>
chip_gen: v5e
topology: v5e:2x2
jax: 0.10.0
libtpu: 0.0.40
codegen_flags: <defaults>
</compile_context>

<pallas_src>
import functools

import jax
import jax.numpy as jnp
from jax.experimental import pallas as pl
from jax.experimental.pallas import tpu as pltpu

BN_EPS = 1e-5
LANE = 128


def _round_up(x, m):
    return (x + m - 1) // m * m


def _conv_tile(x_ref, w_ref):
    """Conv of one padded NHWC image block via kh*kw shifted MXU matmuls.

    x_ref: (1, H+kh-1, W+kw-1, C_in)  VMEM (native dtype)
    w_ref: (kh, kw, C_in, OC_pad)     VMEM (bf16 by default)
    returns (H*W, OC_pad) float32
    """
    _, hp, wp, cin = x_ref.shape
    kh, kw, _, ocp = w_ref.shape
    h = hp - (kh - 1)
    w = wp - (kw - 1)
    hw = h * w
    acc = jnp.zeros((hw, ocp), jnp.float32)
    for ki in range(kh):          # static, unrolled (kh*kw taps)
        for kj in range(kw):
            xs = x_ref[0, ki:ki + h, kj:kj + w, :].reshape(hw, cin)
            # bf16 x bf16 -> f32 accumulate: native fast MXU path.
            acc = acc + jnp.dot(xs.astype(w_ref.dtype), w_ref[ki, kj],
                                preferred_element_type=jnp.float32)
    return acc


def _stats_kernel(x_ref, w_ref, stats_ref):
    """Pass 1: per-channel (mean, M2) of the conv output, accumulated across
    the batch grid axis with Chan's parallel-variance combine (stable; avoids
    the E[x^2]-E[x]^2 cancellation)."""
    n = pl.program_id(0)
    y = _conv_tile(x_ref, w_ref)                              # (HW, OCp) f32
    cnt_b = jnp.float32(y.shape[0])
    mean_b = jnp.sum(y, axis=0, keepdims=True) / cnt_b        # (1, OCp)
    d = y - mean_b
    m2_b = jnp.sum(d * d, axis=0, keepdims=True)              # (1, OCp)

    @pl.when(n == 0)
    def _():
        stats_ref[0:1, :] = mean_b
        stats_ref[1:2, :] = m2_b

    @pl.when(n > 0)
    def _():
        cnt_a = cnt_b * n.astype(jnp.float32)
        mean_a = stats_ref[0:1, :]
        m2_a = stats_ref[1:2, :]
        tot = cnt_a + cnt_b
        delta = mean_b - mean_a
        new_mean = mean_a + delta * (cnt_b / tot)
        new_m2 = m2_a + m2_b + (delta * delta) * (cnt_a * cnt_b / tot)
        stats_ref[0:1, :] = new_mean
        stats_ref[1:2, :] = new_m2


def _conv_affine_kernel(x_ref, w_ref, scale_ref, shift_ref, out_ref, *,
                        apply_relu):
    """Pass 2: conv + folded-BatchNorm affine (+ optional ReLU), lane-dense
    (OC padded to 128) NHWC output."""
    y = _conv_tile(x_ref, w_ref)                              # (HW, OCp) f32
    y = y * scale_ref[...] + shift_ref[...]
    if apply_relu:
        y = jnp.maximum(y, 0.0)
    _, ho, wo, ocp = out_ref.shape
    out_ref[...] = y.reshape(1, ho, wo, ocp).astype(out_ref.dtype)


def conv_block_forward(x, conv_weight, bn_gamma, bn_beta, *, padding,
                       relu=True, compute_dtype=jnp.bfloat16):
    """Forward pass of ConvBlock (stride-1 Conv2d, bias=False -> train-mode
    BatchNorm2d -> optional ReLU).

    x:           (N, C_in, H, W)   NCHW, matching PyTorch
    conv_weight: (C_out, C_in, kh, kw)
    bn_gamma:    (C_out,)
    bn_beta:     (C_out,)
    Returns:     (N, C_out, H_out, W_out) float32, NCHW
    compute_dtype: MXU operand dtype (bf16 default; pass jnp.float32 for
                   exact-f32 conv arithmetic).
    """
    N, C_in, H, W = x.shape
    C_out, c_in2, kh, kw = conv_weight.shape
    assert c_in2 == C_in
    Ho = H + 2 * padding - kh + 1
    Wo = W + 2 * padding - kw + 1
    Hp, Wp = H + 2 * padding, W + 2 * padding
    OCp = _round_up(C_out, LANE)           # lane-dense output channels

    # NCHW -> NHWC (+ zero spatial pad); weight -> (kh, kw, C_in, OC_pad).
    x_nhwc = jnp.transpose(x, (0, 2, 3, 1))
    x_pad = jnp.pad(
        x_nhwc, ((0, 0), (padding, padding), (padding, padding), (0, 0)))
    w_k = jnp.transpose(conv_weight, (2, 3, 1, 0))
    w_k = jnp.pad(w_k, ((0, 0), (0, 0), (0, 0), (0, OCp - C_out))).astype(
        compute_dtype)

    x_bytes = N * Hp * Wp * C_in * x_pad.dtype.itemsize
    w_bytes = kh * kw * C_in * OCp * jnp.dtype(compute_dtype).itemsize
    conv_flops = 2 * N * Ho * Wo * kh * kw * C_in * OCp

    x_spec = pl.BlockSpec((1, Hp, Wp, C_in), lambda n: (n, 0, 0, 0))
    w_spec = pl.BlockSpec((kh, kw, C_in, OCp), lambda n: (0, 0, 0, 0))

    # ---- pass 1: batch statistics of the conv output ----------------------
    stats = pl.pallas_call(
        _stats_kernel,
        out_shape=jax.ShapeDtypeStruct((2, OCp), jnp.float32),
        grid=(N,),
        in_specs=[x_spec, w_spec],
        out_specs=pl.BlockSpec((2, OCp), lambda n: (0, 0)),
        compiler_params=pltpu.CompilerParams(
            dimension_semantics=("arbitrary",)),   # output accumulated over grid
        cost_estimate=pl.CostEstimate(
            flops=conv_flops, transcendentals=0,
            bytes_accessed=x_bytes + w_bytes + 2 * OCp * 4),
    )(x_pad, w_k)

    # Fold BatchNorm (training-mode batch stats, biased variance, eps=1e-5)
    # into a single per-channel scale/shift (tiny (OCp,) math in plain JAX).
    m_total = jnp.float32(N * Ho * Wo)
    mean = stats[0]
    var = stats[1] / m_total
    rstd = jax.lax.rsqrt(var + BN_EPS)
    gamma_p = jnp.pad(bn_gamma.astype(jnp.float32), (0, OCp - C_out))
    beta_p = jnp.pad(bn_beta.astype(jnp.float32), (0, OCp - C_out))
    scale = (gamma_p * rstd).reshape(1, OCp)
    shift = (beta_p - mean * gamma_p * rstd).reshape(1, OCp)

    # ---- pass 2: conv (recomputed) + scale/shift (+ReLU), lane-dense out ---
    out_nhwc = pl.pallas_call(
        functools.partial(_conv_affine_kernel, apply_relu=relu),
        out_shape=jax.ShapeDtypeStruct((N, Ho, Wo, OCp), jnp.float32),
        grid=(N,),
        in_specs=[x_spec, w_spec,
                  pl.BlockSpec((1, OCp), lambda n: (0, 0)),
                  pl.BlockSpec((1, OCp), lambda n: (0, 0))],
        out_specs=pl.BlockSpec((1, Ho, Wo, OCp), lambda n: (n, 0, 0, 0)),
        compiler_params=pltpu.CompilerParams(
            dimension_semantics=("parallel",)),    # independent per image
        cost_estimate=pl.CostEstimate(
            flops=conv_flops, transcendentals=0,
            bytes_accessed=x_bytes + w_bytes + N * Ho * Wo * OCp * 4),
    )(x_pad, w_k, scale, shift)

    # Lane-dense padded NHWC -> the module's NCHW contract.
    # TODO(synk): skip this slice+transpose if the consumer accepts NHWC.
    return jnp.transpose(out_nhwc[..., :C_out], (0, 3, 1, 2))


def _reference(x, w, gamma, beta, padding, relu=True):
    """Pure-JAX/XLA reference of the PyTorch ConvBlock forward (train mode)."""
    y = jax.lax.conv_general_dilated(
        x, w, window_strides=(1, 1),
        padding=[(padding, padding), (padding, padding)],
        dimension_numbers=("NCHW", "OIHW", "NCHW"))
    mean = y.mean(axis=(0, 2, 3), keepdims=True)
    var = y.var(axis=(0, 2, 3), keepdims=True)          # biased, like BN train
    y = (y - mean) * jax.lax.rsqrt(var + BN_EPS)
    y = y * gamma.reshape(1, -1, 1, 1) + beta.reshape(1, -1, 1, 1)
    return jnp.maximum(y, 0.0) if relu else y


if __name__ == "__main__":
    # Small, module-consistent shapes: batch=2, in_channels=4, spatial=16x16,
    # out_channels=8, kernel_size=3, padding=1.
    N, C_in, H, W = 2, 4, 16, 16
    C_out, ksize, padding = 8, 3, 1

    key = jax.random.PRNGKey(0)
    kx, kw_key = jax.random.split(key)

    x = jax.random.normal(kx, (N, C_in, H, W), dtype=jnp.float32)
    fan_in = C_in * ksize * ksize
    bound = 1.0 / (fan_in ** 0.5)
    conv_weight = jax.random.uniform(
        kw_key, (C_out, C_in, ksize, ksize), minval=-bound, maxval=bound,
        dtype=jnp.float32)
    bn_gamma = jnp.ones((C_out,), jnp.float32)   # BatchNorm2d default init
    bn_beta = jnp.zeros((C_out,), jnp.float32)

    out = conv_block_forward(x, conv_weight, bn_gamma, bn_beta,
                             padding=padding, relu=True)
    out = jax.block_until_ready(out)
    assert out.shape == (N, C_out, H, W)

    # Sanity-check vs an XLA reference (loose tolerance: bf16 MXU operands).
    ref = jax.block_until_ready(
        _reference(x, conv_weight, bn_gamma, bn_beta, padding))
    import numpy as np
    np.testing.assert_allclose(np.asarray(out), np.asarray(ref),
                               atol=6e-2, rtol=6e-2)

    print("KERNEL_OK")
</pallas_src>

<mosaic_0001>
module attributes {stable_mosaic.version = 11 : i64} {
  func.func @_stats_kernel(%arg0: i32, %arg1: memref<1x18x18x4xf32, #tpu.memory_space<vmem>>, %arg2: memref<3x3x4x128xbf16, #tpu.memory_space<vmem>>, %arg3: memref<2x128xf32, #tpu.memory_space<vmem>>) attributes {dimension_semantics = [#tpu.dimension_semantics<arbitrary>], iteration_bounds = array<i64: 2>, scalar_prefetch = 0 : i64, scratch_operands = 0 : i64, tpu.core_type = #tpu.core_type<tc>, window_params = [{transform_indices = @transform_0, window_bounds = array<i64: 1, 18, 18, 4>}, {pipeline_mode = #tpu.pipeline_mode<synchronous>, transform_indices = @transform_1, window_bounds = array<i64: 3, 3, 4, 128>}, {pipeline_mode = #tpu.pipeline_mode<synchronous>, transform_indices = @transform_2, window_bounds = array<i64: 2, 128>}]} {
    %cst = arith.constant 0.000000e+00 : f32
    %0 = vector.broadcast %cst : f32 to vector<256x128xf32>
    %c0 = arith.constant 0 : index
    %c0_0 = arith.constant 0 : index
    %c0_1 = arith.constant 0 : index
    %c0_2 = arith.constant 0 : index
    %1 = vector.load %arg1[%c0, %c0_0, %c0_1, %c0_2] : memref<1x18x18x4xf32, #tpu.memory_space<vmem>>, vector<1x16x16x4xf32>
    %2 = vector.shape_cast %1 : vector<1x16x16x4xf32> to vector<16x16x4xf32>
    %3 = vector.shape_cast %2 : vector<16x16x4xf32> to vector<256x4xf32>
    %4 = arith.truncf %3 : vector<256x4xf32> to vector<256x4xbf16>
    %c0_3 = arith.constant 0 : index
    %c0_4 = arith.constant 0 : index
    %c0_5 = arith.constant 0 : index
    %c0_6 = arith.constant 0 : index
    %5 = vector.load %arg2[%c0_3, %c0_4, %c0_5, %c0_6] : memref<3x3x4x128xbf16, #tpu.memory_space<vmem>>, vector<1x1x4x128xbf16>
    %6 = vector.shape_cast %5 : vector<1x1x4x128xbf16> to vector<4x128xbf16>
    %cst_7 = arith.constant dense<0.000000e+00> : vector<256x128xf32>
    %7 = tpu.matmul %4, %6, %cst_7 {dimension_numbers = #tpu.dot_dimension_numbers<[1], [0], [0], [1], [0, 0, 1, 1], [], []>} : vector<256x4xbf16>, vector<4x128xbf16>, vector<256x128xf32> -> vector<256x128xf32>
    %8 = arith.addf %0, %7 : vector<256x128xf32>
    %c0_8 = arith.constant 0 : index
    %c0_9 = arith.constant 0 : index
    %c1 = arith.constant 1 : index
    %c0_10 = arith.constant 0 : index
    %9 = vector.load %arg1[%c0_8, %c0_9, %c1, %c0_10] : memref<1x18x18x4xf32, #tpu.memory_space<vmem>>, vector<1x16x16x4xf32>
    %10 = vector.shape_cast %9 : vector<1x16x16x4xf32> to vector<16x16x4xf32>
    %11 = vector.shape_cast %10 : vector<16x16x4xf32> to vector<256x4xf32>
    %12 = arith.truncf %11 : vector<256x4xf32> to vector<256x4xbf16>
    %c0_11 = arith.constant 0 : index
    %c1_12 = arith.constant 1 : index
    %c0_13 = arith.constant 0 : index
    %c0_14 = arith.constant 0 : index
    %13 = vector.load %arg2[%c0_11, %c1_12, %c0_13, %c0_14] : memref<3x3x4x128xbf16, #tpu.memory_space<vmem>>, vector<1x1x4x128xbf16>
    %14 = vector.shape_cast %13 : vector<1x1x4x128xbf16> to vector<4x128xbf16>
    %cst_15 = arith.constant dense<0.000000e+00> : vector<256x128xf32>
    %15 = tpu.matmul %12, %14, %cst_15 {dimension_numbers = #tpu.dot_dimension_numbers<[1], [0], [0], [1], [0, 0, 1, 1], [], []>} : vector<256x4xbf16>, vector<4x128xbf16>, vector<256x128xf32> -> vector<256x128xf32>
    %16 = arith.addf %8, %15 : vector<256x128xf32>
    %c0_16 = arith.constant 0 : index
    %c0_17 = arith.constant 0 : index
    %c2 = arith.constant 2 : index
    %c0_18 = arith.constant 0 : index
    %17 = vector.load %arg1[%c0_16, %c0_17, %c2, %c0_18] : memref<1x18x18x4xf32, #tpu.memory_space<vmem>>, vector<1x16x16x4xf32>
    %18 = vector.shape_cast %17 : vector<1x16x16x4xf32> to vector<16x16x4xf32>
    %19 = vector.shape_cast %18 : vector<16x16x4xf32> to vector<256x4xf32>
    %20 = arith.truncf %19 : vector<256x4xf32> to vector<256x4xbf16>
    %c0_19 = arith.constant 0 : index
    %c2_20 = arith.constant 2 : index
    %c0_21 = arith.constant 0 : index
    %c0_22 = arith.constant 0 : index
    %21 = vector.load %arg2[%c0_19, %c2_20, %c0_21, %c0_22] : memref<3x3x4x128xbf16, #tpu.memory_space<vmem>>, vector<1x1x4x128xbf16>
    %22 = vector.shape_cast %21 : vector<1x1x4x128xbf16> to vector<4x128xbf16>
    %cst_23 = arith.constant dense<0.000000e+00> : vector<256x128xf32>
    %23 = tpu.matmul %20, %22, %cst_23 {dimension_numbers = #tpu.dot_dimension_numbers<[1], [0], [0], [1], [0, 0, 1, 1], [], []>} : vector<256x4xbf16>, vector<4x128xbf16>, vector<256x128xf32> -> vector<256x128xf32>
    %24 = arith.addf %16, %23 : vector<256x128xf32>
    %c0_24 = arith.constant 0 : index
    %c1_25 = arith.constant 1 : index
    %c0_26 = arith.constant 0 : index
    %c0_27 = arith.constant 0 : index
    %25 = vector.load %arg1[%c0_24, %c1_25, %c0_26, %c0_27] : memref<1x18x18x4xf32, #tpu.memory_space<vmem>>, vector<1x16x16x4xf32>
    %26 = vector.shape_cast %25 : vector<1x16x16x4xf32> to vector<16x16x4xf32>
    %27 = vector.shape_cast %26 : vector<16x16x4xf32> to vector<256x4xf32>
    %28 = arith.truncf %27 : vector<256x4xf32> to vector<256x4xbf16>
    %c1_28 = arith.constant 1 : index
    %c0_29 = arith.constant 0 : index
    %c0_30 = arith.constant 0 : index
    %c0_31 = arith.constant 0 : index
    %29 = vector.load %arg2[%c1_28, %c0_29, %c0_30, %c0_31] : memref<3x3x4x128xbf16, #tpu.memory_space<vmem>>, vector<1x1x4x128xbf16>
    %30 = vector.shape_cast %29 : vector<1x1x4x128xbf16> to vector<4x128xbf16>
    %cst_32 = arith.constant dense<0.000000e+00> : vector<256x128xf32>
    %31 = tpu.matmul %28, %30, %cst_32 {dimension_numbers = #tpu.dot_dimension_numbers<[1], [0], [0], [1], [0, 0, 1, 1], [], []>} : vector<256x4xbf16>, vector<4x128xbf16>, vector<256x128xf32> -> vector<256x128xf32>
    %32 = arith.addf %24, %31 : vector<256x128xf32>
    %c0_33 = arith.constant 0 : index
    %c1_34 = arith.constant 1 : index
    %c1_35 = arith.constant 1 : index
    %c0_36 = arith.constant 0 : index
    %33 = vector.load %arg1[%c0_33, %c1_34, %c1_35, %c0_36] : memref<1x18x18x4xf32, #tpu.memory_space<vmem>>, vector<1x16x16x4xf32>
    %34 = vector.shape_cast %33 : vector<1x16x16x4xf32> to vector<16x16x4xf32>
    %35 = vector.shape_cast %34 : vector<16x16x4xf32> to vector<256x4xf32>
    %36 = arith.truncf %35 : vector<256x4xf32> to vector<256x4xbf16>
    %c1_37 = arith.constant 1 : index
    %c1_38 = arith.constant 1 : index
    %c0_39 = arith.constant 0 : index
    %c0_40 = arith.constant 0 : index
    %37 = vector.load %arg2[%c1_37, %c1_38, %c0_39, %c0_40] : memref<3x3x4x128xbf16, #tpu.memory_space<vmem>>, vector<1x1x4x128xbf16>
    %38 = vector.shape_cast %37 : vector<1x1x4x128xbf16> to vector<4x128xbf16>
    %cst_41 = arith.constant dense<0.000000e+00> : vector<256x128xf32>
    %39 = tpu.matmul %36, %38, %cst_41 {dimension_numbers = #tpu.dot_dimension_numbers<[1], [0], [0], [1], [0, 0, 1, 1], [], []>} : vector<256x4xbf16>, vector<4x128xbf16>, vector<256x128xf32> -> vector<256x128xf32>
    %40 = arith.addf %32, %39 : vector<256x128xf32>
    %c0_42 = arith.constant 0 : index
    %c1_43 = arith.constant 1 : index
    %c2_44 = arith.constant 2 : index
    %c0_45 = arith.constant 0 : index
    %41 = vector.load %arg1[%c0_42, %c1_43, %c2_44, %c0_45] : memref<1x18x18x4xf32, #tpu.memory_space<vmem>>, vector<1x16x16x4xf32>
    %42 = vector.shape_cast %41 : vector<1x16x16x4xf32> to vector<16x16x4xf32>
    %43 = vector.shape_cast %42 : vector<16x16x4xf32> to vector<256x4xf32>
    %44 = arith.truncf %43 : vector<256x4xf32> to vector<256x4xbf16>
    %c1_46 = arith.constant 1 : index
    %c2_47 = arith.constant 2 : index
    %c0_48 = arith.constant 0 : index
    %c0_49 = arith.constant 0 : index
    %45 = vector.load %arg2[%c1_46, %c2_47, %c0_48, %c0_49] : memref<3x3x4x128xbf16, #tpu.memory_space<vmem>>, vector<1x1x4x128xbf16>
    %46 = vector.shape_cast %45 : vector<1x1x4x128xbf16> to vector<4x128xbf16>
    %cst_50 = arith.constant dense<0.000000e+00> : vector<256x128xf32>
    %47 = tpu.matmul %44, %46, %cst_50 {dimension_numbers = #tpu.dot_dimension_numbers<[1], [0], [0], [1], [0, 0, 1, 1], [], []>} : vector<256x4xbf16>, vector<4x128xbf16>, vector<256x128xf32> -> vector<256x128xf32>
    %48 = arith.addf %40, %47 : vector<256x128xf32>
    %c0_51 = arith.constant 0 : index
    %c2_52 = arith.constant 2 : index
    %c0_53 = arith.constant 0 : index
    %c0_54 = arith.constant 0 : index
    %49 = vector.load %arg1[%c0_51, %c2_52, %c0_53, %c0_54] : memref<1x18x18x4xf32, #tpu.memory_space<vmem>>, vector<1x16x16x4xf32>
    %50 = vector.shape_cast %49 : vector<1x16x16x4xf32> to vector<16x16x4xf32>
    %51 = vector.shape_cast %50 : vector<16x16x4xf32> to vector<256x4xf32>
    %52 = arith.truncf %51 : vector<256x4xf32> to vector<256x4xbf16>
    %c2_55 = arith.constant 2 : index
    %c0_56 = arith.constant 0 : index
    %c0_57 = arith.constant 0 : index
    %c0_58 = arith.constant 0 : index
    %53 = vector.load %arg2[%c2_55, %c0_56, %c0_57, %c0_58] : memref<3x3x4x128xbf16, #tpu.memory_space<vmem>>, vector<1x1x4x128xbf16>
    %54 = vector.shape_cast %53 : vector<1x1x4x128xbf16> to vector<4x128xbf16>
    %cst_59 = arith.constant dense<0.000000e+00> : vector<256x128xf32>
    %55 = tpu.matmul %52, %54, %cst_59 {dimension_numbers = #tpu.dot_dimension_numbers<[1], [0], [0], [1], [0, 0, 1, 1], [], []>} : vector<256x4xbf16>, vector<4x128xbf16>, vector<256x128xf32> -> vector<256x128xf32>
    %56 = arith.addf %48, %55 : vector<256x128xf32>
    %c0_60 = arith.constant 0 : index
    %c2_61 = arith.constant 2 : index
    %c1_62 = arith.constant 1 : index
    %c0_63 = arith.constant 0 : index
    %57 = vector.load %arg1[%c0_60, %c2_61, %c1_62, %c0_63] : memref<1x18x18x4xf32, #tpu.memory_space<vmem>>, vector<1x16x16x4xf32>
    %58 = vector.shape_cast %57 : vector<1x16x16x4xf32> to vector<16x16x4xf32>
    %59 = vector.shape_cast %58 : vector<16x16x4xf32> to vector<256x4xf32>
    %60 = arith.truncf %59 : vector<256x4xf32> to vector<256x4xbf16>
    %c2_64 = arith.constant 2 : index
    %c1_65 = arith.constant 1 : index
    %c0_66 = arith.constant 0 : index
    %c0_67 = arith.constant 0 : index
    %61 = vector.load %arg2[%c2_64, %c1_65, %c0_66, %c0_67] : memref<3x3x4x128xbf16, #tpu.memory_space<vmem>>, vector<1x1x4x128xbf16>
    %62 = vector.shape_cast %61 : vector<1x1x4x128xbf16> to vector<4x128xbf16>
    %cst_68 = arith.constant dense<0.000000e+00> : vector<256x128xf32>
    %63 = tpu.matmul %60, %62, %cst_68 {dimension_numbers = #tpu.dot_dimension_numbers<[1], [0], [0], [1], [0, 0, 1, 1], [], []>} : vector<256x4xbf16>, vector<4x128xbf16>, vector<256x128xf32> -> vector<256x128xf32>
    %64 = arith.addf %56, %63 : vector<256x128xf32>
    %c0_69 = arith.constant 0 : index
    %c2_70 = arith.constant 2 : index
    %c2_71 = arith.constant 2 : index
    %c0_72 = arith.constant 0 : index
    %65 = vector.load %arg1[%c0_69, %c2_70, %c2_71, %c0_72] : memref<1x18x18x4xf32, #tpu.memory_space<vmem>>, vector<1x16x16x4xf32>
    %66 = vector.shape_cast %65 : vector<1x16x16x4xf32> to vector<16x16x4xf32>
    %67 = vector.shape_cast %66 : vector<16x16x4xf32> to vector<256x4xf32>
    %68 = arith.truncf %67 : vector<256x4xf32> to vector<256x4xbf16>
    %c2_73 = arith.constant 2 : index
    %c2_74 = arith.constant 2 : index
    %c0_75 = arith.constant 0 : index
    %c0_76 = arith.constant 0 : index
    %69 = vector.load %arg2[%c2_73, %c2_74, %c0_75, %c0_76] : memref<3x3x4x128xbf16, #tpu.memory_space<vmem>>, vector<1x1x4x128xbf16>
    %70 = vector.shape_cast %69 : vector<1x1x4x128xbf16> to vector<4x128xbf16>
    %cst_77 = arith.constant dense<0.000000e+00> : vector<256x128xf32>
    %71 = tpu.matmul %68, %70, %cst_77 {dimension_numbers = #tpu.dot_dimension_numbers<[1], [0], [0], [1], [0, 0, 1, 1], [], []>} : vector<256x4xbf16>, vector<4x128xbf16>, vector<256x128xf32> -> vector<256x128xf32>
    %72 = arith.addf %64, %71 : vector<256x128xf32>
    %cst_78 = arith.constant dense<0.000000e+00> : vector<128xf32>
    %73 = vector.multi_reduction <add>, %72, %cst_78 [0] : vector<256x128xf32> to vector<128xf32>
    %74 = vector.shape_cast %73 : vector<128xf32> to vector<1x128xf32>
    %cst_79 = arith.constant 2.560000e+02 : f32
    %75 = vector.broadcast %cst_79 : f32 to vector<1x128xf32>
    %76 = arith.divf %74, %75 : vector<1x128xf32>
    %77 = vector.broadcast %76 : vector<1x128xf32> to vector<256x128xf32>
    %78 = arith.subf %72, %77 : vector<256x128xf32>
    %79 = arith.mulf %78, %78 : vector<256x128xf32>
    %cst_80 = arith.constant dense<0.000000e+00> : vector<128xf32>
    %80 = vector.multi_reduction <add>, %79, %cst_80 [0] : vector<256x128xf32> to vector<128xf32>
    %81 = vector.shape_cast %80 : vector<128xf32> to vector<1x128xf32>
    %c0_i32 = arith.constant 0 : i32
    %82 = arith.cmpi eq, %arg0, %c0_i32 : i32
    %83 = arith.extui %82 : i1 to i32
    %c0_i32_81 = arith.constant 0 : i32
    %84 = arith.cmpi ne, %83, %c0_i32_81 : i32
    scf.if %84 {
      %c0_85 = arith.constant 0 : index
      %c0_86 = arith.constant 0 : index
      %88 = vector.load %arg3[%c0_85, %c0_86] : memref<2x128xf32, #tpu.memory_space<vmem>>, vector<1x128xf32>
      tpu.vector_store %arg3[%c0_85, %c0_86], %76 {strides = array<i32>} : memref<2x128xf32, #tpu.memory_space<vmem>>, vector<1x128xf32>,
      %c1_87 = arith.constant 1 : index
      %c0_88 = arith.constant 0 : index
      %89 = vector.load %arg3[%c1_87, %c0_88] : memref<2x128xf32, #tpu.memory_space<vmem>>, vector<1x128xf32>
      tpu.vector_store %arg3[%c1_87, %c0_88], %81 {strides = array<i32>} : memref<2x128xf32, #tpu.memory_space<vmem>>, vector<1x128xf32>,
    } else {
    }
    %c0_i32_82 = arith.constant 0 : i32
    %85 = arith.cmpi sgt, %arg0, %c0_i32_82 : i32
    %86 = arith.extui %85 : i1 to i32
    %cst_83 = arith.constant 2.560000e+02 : f32
    %c0_i32_84 = arith.constant 0 : i32
    %87 = arith.cmpi ne, %86, %c0_i32_84 : i32
    scf.if %87 {
      %88 = arith.sitofp %arg0 : i32 to f32
      %89 = arith.mulf %cst_83, %88 : f32
      %c0_85 = arith.constant 0 : index
      %c0_86 = arith.constant 0 : index
      %90 = vector.load %arg3[%c0_85, %c0_86] : memref<2x128xf32, #tpu.memory_space<vmem>>, vector<1x128xf32>
      %c1_87 = arith.constant 1 : index
      %c0_88 = arith.constant 0 : index
      %91 = vector.load %arg3[%c1_87, %c0_88] : memref<2x128xf32, #tpu.memory_space<vmem>>, vector<1x128xf32>
      %92 = arith.addf %89, %cst_83 : f32
      %93 = arith.subf %76, %90 : vector<1x128xf32>
      %94 = arith.divf %cst_83, %92 : f32
      %95 = vector.broadcast %94 : f32 to vector<1x128xf32>
      %96 = arith.mulf %93, %95 : vector<1x128xf32>
      %97 = arith.addf %90, %96 : vector<1x128xf32>
      %98 = arith.addf %91, %81 : vector<1x128xf32>
      %99 = arith.mulf %93, %93 : vector<1x128xf32>
      %100 = arith.mulf %89, %cst_83 : f32
      %101 = arith.divf %100, %92 : f32
      %102 = vector.broadcast %101 : f32 to vector<1x128xf32>
      %103 = arith.mulf %99, %102 : vector<1x128xf32>
      %104 = arith.addf %98, %103 : vector<1x128xf32>
      %c0_89 = arith.constant 0 : index
      %c0_90 = arith.constant 0 : index
      %105 = vector.load %arg3[%c0_89, %c0_90] : memref<2x128xf32, #tpu.memory_space<vmem>>, vector<1x128xf32>
      tpu.vector_store %arg3[%c0_89, %c0_90], %97 {strides = array<i32>} : memref<2x128xf32, #tpu.memory_space<vmem>>, vector<1x128xf32>,
      %c1_91 = arith.constant 1 : index
      %c0_92 = arith.constant 0 : index
      %106 = vector.load %arg3[%c1_91, %c0_92] : memref<2x128xf32, #tpu.memory_space<vmem>>, vector<1x128xf32>
      tpu.vector_store %arg3[%c1_91, %c0_92], %104 {strides = array<i32>} : memref<2x128xf32, #tpu.memory_space<vmem>>, vector<1x128xf32>,
    } else {
    }
    return
  }
  func.func @transform_0(%arg0: i32) -> (i32, i32, i32, i32) {
    %c0_i32 = arith.constant 0 : i32
    %c0_i32_0 = arith.constant 0 : i32
    %c0_i32_1 = arith.constant 0 : i32
    %c0_i32_2 = arith.constant 0 : i32
    return %arg0, %c0_i32, %c0_i32_0, %c0_i32_1 : i32, i32, i32, i32
  }
  func.func @transform_1(%arg0: i32) -> (i32, i32, i32, i32) {
    %c0_i32 = arith.constant 0 : i32
    %c0_i32_0 = arith.constant 0 : i32
    %c0_i32_1 = arith.constant 0 : i32
    %c0_i32_2 = arith.constant 0 : i32
    %c0_i32_3 = arith.constant 0 : i32
    return %c0_i32, %c0_i32_0, %c0_i32_1, %c0_i32_2 : i32, i32, i32, i32
  }
  func.func @transform_2(%arg0: i32) -> (i32, i32) {
    %c0_i32 = arith.constant 0 : i32
    %c0_i32_0 = arith.constant 0 : i32
    %c0_i32_1 = arith.constant 0 : i32
    return %c0_i32, %c0_i32_0 : i32, i32
  }
}

</mosaic_0001>

<llo_original>
// kernel: tpu_custom_call.1
$region0: #{tpu_custom_call.1}
  #allocation0 [shape = 'u32[]', space=smem, size = 0x4, offset = 0x4, fixed_abs, tag = 'smem constant byte address 0x4 - core index']
  #allocation1 [shape = 'u32[72,128]{1,0:T(1,128)}', space=vmem, size = 0x9000, scoped, tag = 'internal scratch']
  %s0 = inlined_call_operand.vmem [shape: f32[2,18,18,4], index: 0, kind: input, shape index: {}]
  %s1 = inlined_call_operand.vmem [shape: bf16[3,3,4,128], index: 1, kind: input, shape index: {}]
  %s2 = inlined_call_operand.hbm [shape: f32[2,128], index: 2, kind: output, shape index: {}]
  %s3 = sld [smem:[#allocation0]]
  $region49: #{tpu_custom_call.1} parent=0
    _
  %s5 = ssub.s32 1, %s3
  %s6 = scalar_select 0, %s5, %s3
  $region1: #{tpu_custom_call.1} parent=0
    #allocation2 [shape = 'u8[1024]{0}', space=vmem, size = 0x400, scoped, tag = 'output window, operand 0, single buffered']
    #allocation3 [shape = 's32[2]{0}', space=sflag, size = 0x8, scoped, tag = 'scoped memory for tpu_custom_call.1']
    %7 = vsyncpa [#allocation3], 0
    loop: start=0, step=1, limit=4
    $region2: #{tpu_custom_call.1} parent=1 // loop_pre_header
      _
    $region3: #{tpu_custom_call.1} parent=1 // loop_header
      %s9 = sphi 0, %s13
      %p10 = scmp.ge.s32.totalorder %s9, 4
      %s19 = sphi 0, %s21
      %s22 = sphi 0, %s19
      %s23 = sphi 0, %s22
      %s39 = sphi 0, %s23
      %s43 = sphi 0, %s43
      %s45 = sphi 0, %s43
      %s46 = sphi 0, %s45
      %s60 = sphi 0, %s46
      %s64 = sphi 0, %s64
      %s66 = sphi 0, %s64
      %s67 = sphi 0, %s66
      %s81 = sphi 0, %s67
    $region4: #{tpu_custom_call.1} parent=1 // loop_header_branch
      %12 = sbr.rel (%p10) target = $region8
    $region5: #{tpu_custom_call.1} parent=1 // loop_body
      %s14 = ssub.s32 %s9, 1
      %s15 = ssub.s32 %s9, 2
      %s16 = sadd.s32 %s9, 1
      %s17 = ssub.s32 %s9, %s16
      %p18 = scmp.eq.s32.totalorder %s17, 0
      %s20 = sadd.s32 %s19, 1
      %s21 = scalar_select %p18, %s19, %s20
      %p24 = pneg %p18
      %p25 = scmp.eq.s32.totalorder %s9, 1
      %p26 = por %p24, %p25
      %p27 = scmp.ne.s32.totalorder %s19, %s22
      %p28 = scmp.eq.s32.totalorder %s9, 0
      %p29 = por %p27, %p28
      %p30 = scmp.ne.s32.totalorder %s19, %s22
      %p31 = scmp.eq.s32.totalorder %s14, 1
      %p32 = por %p30, %p31
      %p33 = scmp.ne.s32.totalorder %s22, %s23
      %p34 = scmp.eq.s32.totalorder %s14, 0
      %p35 = por %p33, %p34
      %p36 = scmp.ne.s32.totalorder %s22, %s23
      %p37 = scmp.eq.s32.totalorder %s15, 1
      %p38 = por %p36, %p37
      %p40 = scmp.ne.s32.totalorder %s23, %s39
      %p41 = scmp.eq.s32.totalorder %s15, 0
      %p42 = por %p40, %p41
      %s44 = sadd.s32 %s43, 1
      %p47 = scmp.eq.s32.totalorder %s9, 1
      %p48 = scmp.ne.s32.totalorder %s43, %s45
      %p49 = scmp.eq.s32.totalorder %s9, 0
      %p50 = por %p48, %p49
      %p51 = scmp.ne.s32.totalorder %s43, %s45
      %p52 = scmp.eq.s32.totalorder %s14, 1
      %p53 = por %p51, %p52
      %p54 = scmp.ne.s32.totalorder %s45, %s46
      %p55 = scmp.eq.s32.totalorder %s14, 0
      %p56 = por %p54, %p55
      %p57 = scmp.ne.s32.totalorder %s45, %s46
      %p58 = scmp.eq.s32.totalorder %s15, 1
      %p59 = por %p57, %p58
      %p61 = scmp.ne.s32.totalorder %s46, %s60
      %p62 = scmp.eq.s32.totalorder %s15, 0
      %p63 = por %p61, %p62
      %s65 = sadd.s32 %s64, 1
      %p68 = scmp.eq.s32.totalorder %s9, 1
      %p69 = scmp.ne.s32.totalorder %s64, %s66
      %p70 = scmp.eq.s32.totalorder %s9, 0
      %p71 = por %p69, %p70
      %p72 = scmp.ne.s32.totalorder %s64, %s66
      %p73 = scmp.eq.s32.totalorder %s14, 1
      %p74 = por %p72, %p73
      %p75 = scmp.ne.s32.totalorder %s66, %s67
      %p76 = scmp.eq.s32.totalorder %s14, 0
      %p77 = por %p75, %p76
      %p78 = scmp.ne.s32.totalorder %s66, %s67
      %p79 = scmp.eq.s32.totalorder %s15, 1
      %p80 = por %p78, %p79
      %p82 = scmp.ne.s32.totalorder %s67, %s81
      %p83 = scmp.eq.s32.totalorder %s15, 0
      %p84 = por %p82, %p83
      %p85 = scmp.le.s32.totalorder 1, %s9
      %p86 = scmp.lt.s32.totalorder %s9, 3
      %p87 = pnand %p85, %p86
      %p88 = pneg %p87
      // Predicated region
      $region9: #{tpu_custom_call.1} parent=5 // pred_check
        _
      $region10: #{tpu_custom_call.1} parent=5 // pred_check_branch
        %90 = sbr.rel (%p87) target = $region12
      $region11: #{tpu_custom_call.1} parent=5 // pred_region
        %s91 = ssub.s32 %s9, 1
        // Predicated region
        $region13: #{tpu_custom_call.1} parent=11 // pred_check
          %p92 = pneg %p56
        $region14: #{tpu_custom_call.1} parent=11 // pred_check_branch
          %94 = sbr.rel (%p92) target = $region16
        $region15: #{tpu_custom_call.1} parent=11 // pred_region
          _
        $region16: #{tpu_custom_call.1} parent=11 // pred_fallthru
          _
      $region12: #{tpu_custom_call.1} parent=5 // pred_fallthru
        _
      %p95 = scmp.lt.s32.totalorder %s9, 2
      // Predicated region
      $region17: #{tpu_custom_call.1} parent=5 // pred_check
        %p96 = pneg %p95
      $region18: #{tpu_custom_call.1} parent=5 // pred_check_branch
        %98 = sbr.rel (%p96) target = $region20
      $region19: #{tpu_custom_call.1} parent=5 // pred_region
        // Predicated region
        $region21: #{tpu_custom_call.1} parent=19 // pred_check
          %p99 = pneg %p29
        $region22: #{tpu_custom_call.1} parent=19 // pred_check_branch
          %101 = sbr.rel (%p99) target = $region24
        $region23: #{tpu_custom_call.1} parent=19 // pred_region
          %p102 = scmp.lt.s32.totalorder %s9, 1
          %s103 = scalar_select %p102, %s9, 1
          %s104 = smul.addr %s103, 54
          %s105 = smul.addr %s104, 8
          %s106 = scalar_lea.vmem %s0, %s105
        $region24: #{tpu_custom_call.1} parent=19 // pred_fallthru
          _
      $region20: #{tpu_custom_call.1} parent=5 // pred_fallthru
        _
      %p107 = scmp.le.s32.totalorder 1, %s9
      %p108 = scmp.lt.s32.totalorder %s9, 3
      %p109 = pnand %p107, %p108
      %p110 = pneg %p109
      // Predicated region
      $region25: #{tpu_custom_call.1} parent=5 // pred_check
        _
      $region26: #{tpu_custom_call.1} parent=5 // pred_check_branch
        %112 = sbr.rel (%p109) target = $region28
      $region27: #{tpu_custom_call.1} parent=5 // pred_region
        %s113 = ssub.s32 %s9, 1
        %p114 = scmp.lt.s32.totalorder %s14, 1
        %s115 = scalar_select %p114, %s14, 1
        %s116 = smul.addr %s115, 54
        %s117 = smul.addr %s116, 8
        %s118 = scalar_lea.vmem %s0, %s117
        %p119 = pneg %p35
        %p120 = pneg %p32
        %p121 = pneg %p56
        %p122 = pneg %p53
        %p123 = pneg %p77
        %p124 = pneg %p74
        %p125 = scmp.lt.s32.totalorder %s14, 1
        %s126 = scalar_select %p125, %s14, 1
        %s127 = smul.addr %s126, 54
        %s128 = smul.addr %s127, 8
        %s129 = scalar_lea.vmem %s0, %s128
        %v131 = vld [vmem:[%s129] sm:$0xff]
        %v132 = vld [vmem:[%s129 + $0x8] sm:$0xff]
        %v133 = vld [vmem:[%s129 + $0x18] sm:$0xff]
        %v134 = vld [vmem:[%s129 + $0x20] sm:$0xff]
        %v135 = vld [vmem:[%s129 + $0x30] sm:$0xff]
        %v136 = vld [vmem:[%s129 + $0x38] sm:$0xff]
        %v137 = vld [vmem:[%s129 + $0x48] sm:$0xff]
        %v138 = vld [vmem:[%s129 + $0x50] sm:$0xff]
        %v139 = vld [vmem:[%s129 + $0x60] sm:$0xff]
        %v140 = vld [vmem:[%s129 + $0x68] sm:$0xff]
        %v141 = vld [vmem:[%s129 + $0x78] sm:$0xff]
        %v142 = vld [vmem:[%s129 + $0x80] sm:$0xff]
        %v143 = vld [vmem:[%s129 + $0x90] sm:$0xff]
        %v144 = vld [vmem:[%s129 + $0x98] sm:$0xff]
        %v145 = vld [vmem:[%s129 + $0xa8] sm:$0xff]
        %v146 = vld [vmem:[%s129 + $0xb0] sm:$0xff]
        %v147 = vld [vmem:[%s129 + $0xc0] sm:$0xff]
        %v148 = vld [vmem:[%s129 + $0xc8] sm:$0xff]
        %v149 = vld [vmem:[%s129 + $0xd8] sm:$0xff]
        %v150 = vld [vmem:[%s129 + $0xe0] sm:$0xff]
        %v151 = vld [vmem:[%s129 + $0xf0] sm:$0xff]
        %v152 = vld [vmem:[%s129 + $0xf8] sm:$0xff]
        %v153 = vld [vmem:[%s129 + $0x108] sm:$0xff]
        %v154 = vld [vmem:[%s129 + $0x110] sm:$0xff]
        %v155 = vld [vmem:[%s129 + $0x120] sm:$0xff]
        %v156 = vld [vmem:[%s129 + $0x128] sm:$0xff]
        %v157 = vld [vmem:[%s129 + $0x138] sm:$0xff]
        %v158 = vld [vmem:[%s129 + $0x140] sm:$0xff]
        %v159 = vld [vmem:[%s129 + $0x150] sm:$0xff]
        %v160 = vld [vmem:[%s129 + $0x158] sm:$0xff]
        %v161 = vld [vmem:[%s129 + $0x168] sm:$0xff]
        %v162 = vld [vmem:[%s129 + $0x170] sm:$0xff]
        %v163 = vpack.c.bf16 %v132, %v131
        %v164 = vpack.c.bf16 %v134, %v133
        %v165 = vpack.c.bf16 %v136, %v135
        %v166 = vpack.c.bf16 %v138, %v137
        %v167 = vpack.c.bf16 %v140, %v139
        %v168 = vpack.c.bf16 %v142, %v141
        %v169 = vpack.c.bf16 %v144, %v143
        %v170 = vpack.c.bf16 %v146, %v145
        %v171 = vpack.c.bf16 %v148, %v147
        %v172 = vpack.c.bf16 %v150, %v149
        %v173 = vpack.c.bf16 %v152, %v151
        %v174 = vpack.c.bf16 %v154, %v153
        %v175 = vpack.c.bf16 %v156, %v155
        %v176 = vpack.c.bf16 %v158, %v157
        %v177 = vpack.c.bf16 %v160, %v159
        %v178 = vpack.c.bf16 %v162, %v161
        %v179 = vld [vmem:[%s1] sm:$0x3]
        %v180 = vld [vmem:[%s129 + $0x1] sm:$0xff]
        %v181 = vld [vmem:[%s129 + $0x9] sm:$0xff]
        %v182 = vld [vmem:[%s129 + $0x19] sm:$0xff]
        %v183 = vld [vmem:[%s129 + $0x21] sm:$0xff]
        %v184 = vld [vmem:[%s129 + $0x31] sm:$0xff]
        %v185 = vld [vmem:[%s129 + $0x39] sm:$0xff]
        %v186 = vld [vmem:[%s129 + $0x49] sm:$0xff]
        %v187 = vld [vmem:[%s129 + $0x51] sm:$0xff]
        %v188 = vld [vmem:[%s129 + $0x61] sm:$0xff]
        %v189 = vld [vmem:[%s129 + $0x69] sm:$0xff]
        %v190 = vld [vmem:[%s129 + $0x79] sm:$0xff]
        %v191 = vld [vmem:[%s129 + $0x81] sm:$0xff]
        %v192 = vld [vmem:[%s129 + $0x91] sm:$0xff]
        %v193 = vld [vmem:[%s129 + $0x99] sm:$0xff]
        %v194 = vld [vmem:[%s129 + $0xa9] sm:$0xff]
        %v195 = vld [vmem:[%s129 + $0xb1] sm:$0xff]
        %v196 = vld [vmem:[%s129 + $0xc1] sm:$0xff]
        %v197 = vld [vmem:[%s129 + $0xc9] sm:$0xff]
        %v198 = vld [vmem:[%s129 + $0xd9] sm:$0xff]
        %v199 = vld [vmem:[%s129 + $0xe1] sm:$0xff]
        %v200 = vld [vmem:[%s129 + $0xf1] sm:$0xff]
        %v201 = vld [vmem:[%s129 + $0xf9] sm:$0xff]
        %v202 = vld [vmem:[%s129 + $0x109] sm:$0xff]
        %v203 = vld [vmem:[%s129 + $0x111] sm:$0xff]
        %v204 = vld [vmem:[%s129 + $0x121] sm:$0xff]
        %v205 = vld [vmem:[%s129 + $0x129] sm:$0xff]
        %v206 = vld [vmem:[%s129 + $0x139] sm:$0xff]
        %v207 = vld [vmem:[%s129 + $0x141] sm:$0xff]
        %v208 = vld [vmem:[%s129 + $0x151] sm:$0xff]
        %v209 = vld [vmem:[%s129 + $0x159] sm:$0xff]
        %v210 = vld [vmem:[%s129 + $0x169] sm:$0xff]
        %v211 = vld [vmem:[%s129 + $0x171] sm:$0xff]
        %v212 = vpack.c.bf16 %v181, %v180
        %v213 = vpack.c.bf16 %v183, %v182
        %v214 = vpack.c.bf16 %v185, %v184
        %v215 = vpack.c.bf16 %v187, %v186
        %v216 = vpack.c.bf16 %v189, %v188
        %v217 = vpack.c.bf16 %v191, %v190
        %v218 = vpack.c.bf16 %v193, %v192
        %v219 = vpack.c.bf16 %v195, %v194
        %v220 = vpack.c.bf16 %v197, %v196
        %v221 = vpack.c.bf16 %v199, %v198
        %v222 = vpack.c.bf16 %v201, %v200
        %v223 = vpack.c.bf16 %v203, %v202
        %v224 = vpack.c.bf16 %v205, %v204
        %v225 = vpack.c.bf16 %v207, %v206
        %v226 = vpack.c.bf16 %v209, %v208
        %v227 = vpack.c.bf16 %v211, %v210
        %s228 = scalar_lea.vmem %s1, 2
        %v229 = vld [vmem:[%s228] sm:$0x3]
        %vm230 = vcmask 31744
        %v232 = vsel %vm230, %v212, 0
        %v235 = vsel %vm230, %v213, 0
        %v238 = vsel %vm230, %v214, 0
        %v241 = vsel %vm230, %v215, 0
        %v244 = vsel %vm230, %v216, 0
        %v247 = vsel %vm230, %v217, 0
        %v250 = vsel %vm230, %v218, 0
        %v253 = vsel %vm230, %v219, 0
        %v256 = vsel %vm230, %v220, 0
        %v259 = vsel %vm230, %v221, 0
        %v262 = vsel %vm230, %v222, 0
        %v265 = vsel %vm230, %v223, 0
        %v268 = vsel %vm230, %v224, 0
        %v271 = vsel %vm230, %v225, 0
        %v274 = vsel %vm230, %v226, 0
        %v277 = vsel %vm230, %v227, 0
        %vm279 = vcmask 1041408
        %v281 = vsel %vm279, %v229, 0
        %283 = vmatpush.bf16.msra.mxu0 0
        %284 = vmatpush.bf16.msra.mxu0 0
        %285 = vmatpush.bf16.msra.mxu0 0
        %286 = vmatpush.bf16.msra.mxu0 0
        %287 = vmatpush.bf16.msra.mxu0 0
        %288 = vmatpush.bf16.msra.mxu0 0
        %289 = vmatpush.bf16.msra.mxu0 0
        %290 = vmatpush.bf16.msra.mxu0 %v281
        %291 = vmatmul.bf16.gmra.mxu0 %v232
        %v292 = vpop.f32.mrf.mxu0
        %v293 = vadd.f32 0.0, %v292
        %v294 = vpop.f32.mrf.mxu0
        %v295 = vadd.f32 0.0, %v294
        %296 = vmatmul.bf16.gmra.mxu0 %v235
        %v297 = vpop.f32.mrf.mxu0
        %v298 = vadd.f32 0.0, %v297
        %v299 = vpop.f32.mrf.mxu0
        %v300 = vadd.f32 0.0, %v299
        %301 = vmatmul.bf16.gmra.mxu0 %v238
        %v302 = vpop.f32.mrf.mxu0
        %v303 = vadd.f32 0.0, %v302
        %v304 = vpop.f32.mrf.mxu0
        %v305 = vadd.f32 0.0, %v304
        %306 = vmatmul.bf16.gmra.mxu0 %v241
        %v307 = vpop.f32.mrf.mxu0
        %v308 = vadd.f32 0.0, %v307
        %v309 = vpop.f32.mrf.mxu0
        %v310 = vadd.f32 0.0, %v309
        %311 = vmatmul.bf16.gmra.mxu0 %v244
        %v312 = vpop.f32.mrf.mxu0
        %v313 = vadd.f32 0.0, %v312
        %v314 = vpop.f32.mrf.mxu0
        %v315 = vadd.f32 0.0, %v314
        %316 = vmatmul.bf16.gmra.mxu0 %v247
        %v317 = vpop.f32.mrf.mxu0
        %v318 = vadd.f32 0.0, %v317
        %v319 = vpop.f32.mrf.mxu0
        %v320 = vadd.f32 0.0, %v319
        %321 = vmatmul.bf16.gmra.mxu0 %v250
        %v322 = vpop.f32.mrf.mxu0
        %v323 = vadd.f32 0.0, %v322
        %v324 = vpop.f32.mrf.mxu0
        %v325 = vadd.f32 0.0, %v324
        %326 = vmatmul.bf16.gmra.mxu0 %v253
        %v327 = vpop.f32.mrf.mxu0
        %v328 = vadd.f32 0.0, %v327
        %v329 = vpop.f32.mrf.mxu0
        %v330 = vadd.f32 0.0, %v329
        %331 = vmatmul.bf16.gmra.mxu0 %v256
        %v332 = vpop.f32.mrf.mxu0
        %v333 = vadd.f32 0.0, %v332
        %v334 = vpop.f32.mrf.mxu0
        %v335 = vadd.f32 0.0, %v334
        %336 = vmatmul.bf16.gmra.mxu0 %v259
        %v337 = vpop.f32.mrf.mxu0
        %v338 = vadd.f32 0.0, %v337
        %v339 = vpop.f32.mrf.mxu0
        %v340 = vadd.f32 0.0, %v339
        %341 = vmatmul.bf16.gmra.mxu0 %v262
        %v342 = vpop.f32.mrf.mxu0
        %v343 = vadd.f32 0.0, %v342
        %v344 = vpop.f32.mrf.mxu0
        %v345 = vadd.f32 0.0, %v344
        %346 = vmatmul.bf16.gmra.mxu0 %v265
        %v347 = vpop.f32.mrf.mxu0
        %v348 = vadd.f32 0.0, %v347
        %v349 = vpop.f32.mrf.mxu0
        %v350 = vadd.f32 0.0, %v349
        %351 = vmatmul.bf16.gmra.mxu0 %v268
        %v352 = vpop.f32.mrf.mxu0
        %v353 = vadd.f32 0.0, %v352
        %v354 = vpop.f32.mrf.mxu0
        %v355 = vadd.f32 0.0, %v354
        %356 = vmatmul.bf16.gmra.mxu0 %v271
        %v357 = vpop.f32.mrf.mxu0
        %v358 = vadd.f32 0.0, %v357
        %v359 = vpop.f32.mrf.mxu0
        %v360 = vadd.f32 0.0, %v359
        %361 = vmatmul.bf16.gmra.mxu0 %v274
        %v362 = vpop.f32.mrf.mxu0
        %v363 = vadd.f32 0.0, %v362
        %v364 = vpop.f32.mrf.mxu0
        %v365 = vadd.f32 0.0, %v364
        %366 = vmatmul.bf16.gmra.mxu0 %v277
        %v367 = vpop.f32.mrf.mxu0
        %v368 = vadd.f32 0.0, %v367
        %v369 = vpop.f32.mrf.mxu0
        %v370 = vadd.f32 0.0, %v369
        %371 = vdwg.mxu0
        %v373 = vsel %vm230, %v163, 0
        %v376 = vsel %vm230, %v164, 0
        %v379 = vsel %vm230, %v165, 0
        %v382 = vsel %vm230, %v166, 0
        %v385 = vsel %vm230, %v167, 0
        %v388 = vsel %vm230, %v168, 0
        %v391 = vsel %vm230, %v169, 0
        %v394 = vsel %vm230, %v170, 0
        %v397 = vsel %vm230, %v171, 0
        %v400 = vsel %vm230, %v172, 0
        %v403 = vsel %vm230, %v173, 0
        %v406 = vsel %vm230, %v174, 0
        %v409 = vsel %vm230, %v175, 0
        %v412 = vsel %vm230, %v176, 0
        %v415 = vsel %vm230, %v177, 0
        %v418 = vsel %vm230, %v178, 0
        %v421 = vsel %vm279, %v179, 0
        %423 = vmatpush.bf16.msra.mxu0 0
        %424 = vmatpush.bf16.msra.mxu0 0
        %425 = vmatpush.bf16.msra.mxu0 0
        %426 = vmatpush.bf16.msra.mxu0 0
        %427 = vmatpush.bf16.msra.mxu0 0
        %428 = vmatpush.bf16.msra.mxu0 0
        %429 = vmatpush.bf16.msra.mxu0 0
        %430 = vmatpush.bf16.msra.mxu0 %v421
        %431 = vmatmul.bf16.gmra.mxu0 %v373
        %v432 = vpop.f32.mrf.mxu0
        %v433 = vadd.f32 %v293, %v432
        %v434 = vpop.f32.mrf.mxu0
        %v435 = vadd.f32 %v295, %v434
        %436 = vmatmul.bf16.gmra.mxu0 %v376
        %v437 = vpop.f32.mrf.mxu0
        %v438 = vadd.f32 %v298, %v437
        %v439 = vpop.f32.mrf.mxu0
        %v440 = vadd.f32 %v300, %v439
        %441 = vmatmul.bf16.gmra.mxu0 %v379
        %v442 = vpop.f32.mrf.mxu0
        %v443 = vadd.f32 %v303, %v442
        %v444 = vpop.f32.mrf.mxu0
        %v445 = vadd.f32 %v305, %v444
        %446 = vmatmul.bf16.gmra.mxu0 %v382
        %v447 = vpop.f32.mrf.mxu0
        %v448 = vadd.f32 %v308, %v447
        %v449 = vpop.f32.mrf.mxu0
        %v450 = vadd.f32 %v310, %v449
        %451 = vmatmul.bf16.gmra.mxu0 %v385
        %v452 = vpop.f32.mrf.mxu0
        %v453 = vadd.f32 %v313, %v452
        %v454 = vpop.f32.mrf.mxu0
        %v455 = vadd.f32 %v315, %v454
        %456 = vmatmul.bf16.gmra.mxu0 %v388
        %v457 = vpop.f32.mrf.mxu0
        %v458 = vadd.f32 %v318, %v457
        %v459 = vpop.f32.mrf.mxu0
        %v460 = vadd.f32 %v320, %v459
        %461 = vmatmul.bf16.gmra.mxu0 %v391
        %v462 = vpop.f32.mrf.mxu0
        %v463 = vadd.f32 %v323, %v462
        %v464 = vpop.f32.mrf.mxu0
        %v465 = vadd.f32 %v325, %v464
        %466 = vmatmul.bf16.gmra.mxu0 %v394
        %v467 = vpop.f32.mrf.mxu0
        %v468 = vadd.f32 %v328, %v467
        %v469 = vpop.f32.mrf.mxu0
        %v470 = vadd.f32 %v330, %v469
        %471 = vmatmul.bf16.gmra.mxu0 %v397
        %v472 = vpop.f32.mrf.mxu0
        %v473 = vadd.f32 %v333, %v472
        %v474 = vpop.f32.mrf.mxu0
        %v475 = vadd.f32 %v335, %v474
        %476 = vmatmul.bf16.gmra.mxu0 %v400
        %v477 = vpop.f32.mrf.mxu0
        %v478 = vadd.f32 %v338, %v477
        %v479 = vpop.f32.mrf.mxu0
        %v480 = vadd.f32 %v340, %v479
        %481 = vmatmul.bf16.gmra.mxu0 %v403
        %v482 = vpop.f32.mrf.mxu0
        %v483 = vadd.f32 %v343, %v482
        %v484 = vpop.f32.mrf.mxu0
        %v485 = vadd.f32 %v345, %v484
        %486 = vmatmul.bf16.gmra.mxu0 %v406
        %v487 = vpop.f32.mrf.mxu0
        %v488 = vadd.f32 %v348, %v487
        %v489 = vpop.f32.mrf.mxu0
        %v490 = vadd.f32 %v350, %v489
        %491 = vmatmul.bf16.gmra.mxu0 %v409
        %v492 = vpop.f32.mrf.mxu0
        %v493 = vadd.f32 %v353, %v492
        %v494 = vpop.f32.mrf.mxu0
        %v495 = vadd.f32 %v355, %v494
        %496 = vmatmul.bf16.gmra.mxu0 %v412
        %v497 = vpop.f32.mrf.mxu0
        %v498 = vadd.f32 %v358, %v497
        %v499 = vpop.f32.mrf.mxu0
        %v500 = vadd.f32 %v360, %v499
        %501 = vmatmul.bf16.gmra.mxu0 %v415
        %v502 = vpop.f32.mrf.mxu0
        %v503 = vadd.f32 %v363, %v502
        %v504 = vpop.f32.mrf.mxu0
        %v505 = vadd.f32 %v365, %v504
        %506 = vmatmul.bf16.gmra.mxu0 %v418
        %v507 = vpop.f32.mrf.mxu0
        %v508 = vadd.f32 %v368, %v507
        %v509 = vpop.f32.mrf.mxu0
        %v510 = vadd.f32 %v370, %v509
        %511 = vdwg.mxu0
        %v512 = vld [vmem:[%s129 + $0x2] sm:$0xff]
        %v513 = vld [vmem:[%s129 + $0xa] sm:$0xff]
        %v514 = vld [vmem:[%s129 + $0x1a] sm:$0xff]
        %v515 = vld [vmem:[%s129 + $0x22] sm:$0xff]
        %v516 = vld [vmem:[%s129 + $0x32] sm:$0xff]
        %v517 = vld [vmem:[%s129 + $0x3a] sm:$0xff]
        %v518 = vld [vmem:[%s129 + $0x4a] sm:$0xff]
        %v519 = vld [vmem:[%s129 + $0x52] sm:$0xff]
        %v520 = vld [vmem:[%s129 + $0x62] sm:$0xff]
        %v521 = vld [vmem:[%s129 + $0x6a] sm:$0xff]
        %v522 = vld [vmem:[%s129 + $0x7a] sm:$0xff]
        %v523 = vld [vmem:[%s129 + $0x82] sm:$0xff]
        %v524 = vld [vmem:[%s129 + $0x92] sm:$0xff]
        %v525 = vld [vmem:[%s129 + $0x9a] sm:$0xff]
        %v526 = vld [vmem:[%s129 + $0xaa] sm:$0xff]
        %v527 = vld [vmem:[%s129 + $0xb2] sm:$0xff]
        %v528 = vld [vmem:[%s129 + $0xc2] sm:$0xff]
        %v529 = vld [vmem:[%s129 + $0xca] sm:$0xff]
        %v530 = vld [vmem:[%s129 + $0xda] sm:$0xff]
        %v531 = vld [vmem:[%s129 + $0xe2] sm:$0xff]
        %v532 = vld [vmem:[%s129 + $0xf2] sm:$0xff]
        %v533 = vld [vmem:[%s129 + $0xfa] sm:$0xff]
        %v534 = vld [vmem:[%s129 + $0x10a] sm:$0xff]
        %v535 = vld [vmem:[%s129 + $0x112] sm:$0xff]
        %v536 = vld [vmem:[%s129 + $0x122] sm:$0xff]
        %v537 = vld [vmem:[%s129 + $0x12a] sm:$0xff]
        %v538 = vld [vmem:[%s129 + $0x13a] sm:$0xff]
        %v539 = vld [vmem:[%s129 + $0x142] sm:$0xff]
        %v540 = vld [vmem:[%s129 + $0x152] sm:$0xff]
        %v541 = vld [vmem:[%s129 + $0x15a] sm:$0xff]
        %v542 = vld [vmem:[%s129 + $0x16a] sm:$0xff]
        %v543 = vld [vmem:[%s129 + $0x172] sm:$0xff]
        %v544 = vpack.c.bf16 %v513, %v512
        %v545 = vpack.c.bf16 %v515, %v514
        %v546 = vpack.c.bf16 %v517, %v516
        %v547 = vpack.c.bf16 %v519, %v518
        %v548 = vpack.c.bf16 %v521, %v520
        %v549 = vpack.c.bf16 %v523, %v522
        %v550 = vpack.c.bf16 %v525, %v524
        %v551 = vpack.c.bf16 %v527, %v526
        %v552 = vpack.c.bf16 %v529, %v528
        %v553 = vpack.c.bf16 %v531, %v530
        %v554 = vpack.c.bf16 %v533, %v532
        %v555 = vpack.c.bf16 %v535, %v534
        %v556 = vpack.c.bf16 %v537, %v536
        %v557 = vpack.c.bf16 %v539, %v538
        %v558 = vpack.c.bf16 %v541, %v540
        %v559 = vpack.c.bf16 %v543, %v542
        %s560 = scalar_lea.vmem %s1, 4
        %v561 = vld [vmem:[%s560] sm:$0x3]
        %v563 = vsel %vm230, %v544, 0
        %v566 = vsel %vm230, %v545, 0
        %v569 = vsel %vm230, %v546, 0
        %v572 = vsel %vm230, %v547, 0
        %v575 = vsel %vm230, %v548, 0
        %v578 = vsel %vm230, %v549, 0
        %v581 = vsel %vm230, %v550, 0
        %v584 = vsel %vm230, %v551, 0
        %v587 = vsel %vm230, %v552, 0
        %v590 = vsel %vm230, %v553, 0
        %v593 = vsel %vm230, %v554, 0
        %v596 = vsel %vm230, %v555, 0
        %v599 = vsel %vm230, %v556, 0
        %v602 = vsel %vm230, %v557, 0
        %v605 = vsel %vm230, %v558, 0
        %v608 = vsel %vm230, %v559, 0
        %v611 = vsel %vm279, %v561, 0
        %613 = vmatpush.bf16.msra.mxu0 0
        %614 = vmatpush.bf16.msra.mxu0 0
        %615 = vmatpush.bf16.msra.mxu0 0
        %616 = vmatpush.bf16.msra.mxu0 0
        %617 = vmatpush.bf16.msra.mxu0 0
        %618 = vmatpush.bf16.msra.mxu0 0
        %619 = vmatpush.bf16.msra.mxu0 0
        %620 = vmatpush.bf16.msra.mxu0 %v611
        %621 = vmatmul.bf16.gmra.mxu0 %v563
        %v622 = vpop.f32.mrf.mxu0
        %v623 = vadd.f32 0.0, %v622
        %v624 = vpop.f32.mrf.mxu0
        %v625 = vadd.f32 0.0, %v624
        %626 = vmatmul.bf16.gmra.mxu0 %v566
        %v627 = vpop.f32.mrf.mxu0
        %v628 = vadd.f32 0.0, %v627
        %v629 = vpop.f32.mrf.mxu0
        %v630 = vadd.f32 0.0, %v629
        %631 = vmatmul.bf16.gmra.mxu0 %v569
        %v632 = vpop.f32.mrf.mxu0
        %v633 = vadd.f32 0.0, %v632
        %v634 = vpop.f32.mrf.mxu0
        %v635 = vadd.f32 0.0, %v634
        %636 = vmatmul.bf16.gmra.mxu0 %v572
        %v637 = vpop.f32.mrf.mxu0
        %v638 = vadd.f32 0.0, %v637
        %v639 = vpop.f32.mrf.mxu0
        %v640 = vadd.f32 0.0, %v639
        %641 = vmatmul.bf16.gmra.mxu0 %v575
        %v642 = vpop.f32.mrf.mxu0
        %v643 = vadd.f32 0.0, %v642
        %v644 = vpop.f32.mrf.mxu0
        %v645 = vadd.f32 0.0, %v644
        %646 = vmatmul.bf16.gmra.mxu0 %v578
        %v647 = vpop.f32.mrf.mxu0
        %v648 = vadd.f32 0.0, %v647
        %v649 = vpop.f32.mrf.mxu0
        %v650 = vadd.f32 0.0, %v649
        %651 = vmatmul.bf16.gmra.mxu0 %v581
        %v652 = vpop.f32.mrf.mxu0
        %v653 = vadd.f32 0.0, %v652
        %v654 = vpop.f32.mrf.mxu0
        %v655 = vadd.f32 0.0, %v654
        %656 = vmatmul.bf16.gmra.mxu0 %v584
        %v657 = vpop.f32.mrf.mxu0
        %v658 = vadd.f32 0.0, %v657
        %v659 = vpop.f32.mrf.mxu0
        %v660 = vadd.f32 0.0, %v659
        %661 = vmatmul.bf16.gmra.mxu0 %v587
        %v662 = vpop.f32.mrf.mxu0
        %v663 = vadd.f32 0.0, %v662
        %v664 = vpop.f32.mrf.mxu0
        %v665 = vadd.f32 0.0, %v664
        %666 = vmatmul.bf16.gmra.mxu0 %v590
        %v667 = vpop.f32.mrf.mxu0
        %v668 = vadd.f32 0.0, %v667
        %v669 = vpop.f32.mrf.mxu0
        %v670 = vadd.f32 0.0, %v669
        %671 = vmatmul.bf16.gmra.mxu0 %v593
        %v672 = vpop.f32.mrf.mxu0
        %v673 = vadd.f32 0.0, %v672
        %v674 = vpop.f32.mrf.mxu0
        %v675 = vadd.f32 0.0, %v674
        %676 = vmatmul.bf16.gmra.mxu0 %v596
        %v677 = vpop.f32.mrf.mxu0
        %v678 = vadd.f32 0.0, %v677
        %v679 = vpop.f32.mrf.mxu0
        %v680 = vadd.f32 0.0, %v679
        %681 = vmatmul.bf16.gmra.mxu0 %v599
        %v682 = vpop.f32.mrf.mxu0
        %v683 = vadd.f32 0.0, %v682
        %v684 = vpop.f32.mrf.mxu0
        %v685 = vadd.f32 0.0, %v684
        %686 = vmatmul.bf16.gmra.mxu0 %v602
        %v687 = vpop.f32.mrf.mxu0
        %v688 = vadd.f32 0.0, %v687
        %v689 = vpop.f32.mrf.mxu0
        %v690 = vadd.f32 0.0, %v689
        %691 = vmatmul.bf16.gmra.mxu0 %v605
        %v692 = vpop.f32.mrf.mxu0
        %v693 = vadd.f32 0.0, %v692
        %v694 = vpop.f32.mrf.mxu0
        %v695 = vadd.f32 0.0, %v694
        %696 = vmatmul.bf16.gmra.mxu0 %v608
        %v697 = vpop.f32.mrf.mxu0
        %v698 = vadd.f32 0.0, %v697
        %v699 = vpop.f32.mrf.mxu0
        %v700 = vadd.f32 0.0, %v699
        %701 = vdwg.mxu0
        %v702 = vadd.f32 %v433, %v623
        %v703 = vadd.f32 %v435, %v625
        %v704 = vadd.f32 %v438, %v628
        %v705 = vadd.f32 %v440, %v630
        %v706 = vadd.f32 %v443, %v633
        %v707 = vadd.f32 %v445, %v635
        %v708 = vadd.f32 %v448, %v638
        %v709 = vadd.f32 %v450, %v640
        %v710 = vadd.f32 %v453, %v643
        %v711 = vadd.f32 %v455, %v645
        %v712 = vadd.f32 %v458, %v648
        %v713 = vadd.f32 %v460, %v650
        %v714 = vadd.f32 %v463, %v653
        %v715 = vadd.f32 %v465, %v655
        %v716 = vadd.f32 %v468, %v658
        %v717 = vadd.f32 %v470, %v660
        %v718 = vadd.f32 %v473, %v663
        %v719 = vadd.f32 %v475, %v665
        %v720 = vadd.f32 %v478, %v668
        %v721 = vadd.f32 %v480, %v670
        %v722 = vadd.f32 %v483, %v673
        %v723 = vadd.f32 %v485, %v675
        %v724 = vadd.f32 %v488, %v678
        %v725 = vadd.f32 %v490, %v680
        %v726 = vadd.f32 %v493, %v683
        %v727 = vadd.f32 %v495, %v685
        %v728 = vadd.f32 %v498, %v688
        %v729 = vadd.f32 %v500, %v690
        %v730 = vadd.f32 %v503, %v693
        %v731 = vadd.f32 %v505, %v695
        %v732 = vadd.f32 %v508, %v698
        %v733 = vadd.f32 %v510, %v700
        %s734 = scalar_lea.vmem %s129, 24
        %v735 = vld [vmem:[%s734] sm:$0xff]
        %v736 = vld [vmem:[%s734 + $0x8] sm:$0xff]
        %v737 = vld [vmem:[%s734 + $0x18] sm:$0xff]
        %v738 = vld [vmem:[%s734 + $0x20] sm:$0xff]
        %v739 = vld [vmem:[%s734 + $0x30] sm:$0xff]
        %v740 = vld [vmem:[%s734 + $0x38] sm:$0xff]
        %v741 = vld [vmem:[%s734 + $0x48] sm:$0xff]
        %v742 = vld [vmem:[%s734 + $0x50] sm:$0xff]
        %v743 = vld [vmem:[%s734 + $0x60] sm:$0xff]
        %v744 = vld [vmem:[%s734 + $0x68] sm:$0xff]
        %v745 = vld [vmem:[%s734 + $0x78] sm:$0xff]
        %v746 = vld [vmem:[%s734 + $0x80] sm:$0xff]
        %v747 = vld [vmem:[%s734 + $0x90] sm:$0xff]
        %v748 = vld [vmem:[%s734 + $0x98] sm:$0xff]
        %v749 = vld [vmem:[%s734 + $0xa8] sm:$0xff]
        %v750 = vld [vmem:[%s734 + $0xb0] sm:$0xff]
        %v751 = vld [vmem:[%s734 + $0xc0] sm:$0xff]
        %v752 = vld [vmem:[%s734 + $0xc8] sm:$0xff]
        %v753 = vld [vmem:[%s734 + $0xd8] sm:$0xff]
        %v754 = vld [vmem:[%s734 + $0xe0] sm:$0xff]
        %v755 = vld [vmem:[%s734 + $0xf0] sm:$0xff]
        %v756 = vld [vmem:[%s734 + $0xf8] sm:$0xff]
        %v757 = vld [vmem:[%s734 + $0x108] sm:$0xff]
        %v758 = vld [vmem:[%s734 + $0x110] sm:$0xff]
        %v759 = vld [vmem:[%s734 + $0x120] sm:$0xff]
        %v760 = vld [vmem:[%s734 + $0x128] sm:$0xff]
        %v761 = vld [vmem:[%s734 + $0x138] sm:$0xff]
        %v762 = vld [vmem:[%s734 + $0x140] sm:$0xff]
        %v763 = vld [vmem:[%s734 + $0x150] sm:$0xff]
        %v764 = vld [vmem:[%s734 + $0x158] sm:$0xff]
        %v765 = vld [vmem:[%s734 + $0x168] sm:$0xff]
        %v766 = vld [vmem:[%s734 + $0x170] sm:$0xff]
        %v767 = vpack.c.bf16 %v736, %v735
        %v768 = vpack.c.bf16 %v738, %v737
        %v769 = vpack.c.bf16 %v740, %v739
        %v770 = vpack.c.bf16 %v742, %v741
        %v771 = vpack.c.bf16 %v744, %v743
        %v772 = vpack.c.bf16 %v746, %v745
        %v773 = vpack.c.bf16 %v748, %v747
        %v774 = vpack.c.bf16 %v750, %v749
        %v775 = vpack.c.bf16 %v752, %v751
        %v776 = vpack.c.bf16 %v754, %v753
        %v777 = vpack.c.bf16 %v756, %v755
        %v778 = vpack.c.bf16 %v758, %v757
        %v779 = vpack.c.bf16 %v760, %v759
        %v780 = vpack.c.bf16 %v762, %v761
        %v781 = vpack.c.bf16 %v764, %v763
        %v782 = vpack.c.bf16 %v766, %v765
        %s783 = scalar_lea.vmem %s1, 6
        %v784 = vld [vmem:[%s783] sm:$0x3]
        %v786 = vsel %vm230, %v767, 0
        %v789 = vsel %vm230, %v768, 0
        %v792 = vsel %vm230, %v769, 0
        %v795 = vsel %vm230, %v770, 0
        %v798 = vsel %vm230, %v771, 0
        %v801 = vsel %vm230, %v772, 0
        %v804 = vsel %vm230, %v773, 0
        %v807 = vsel %vm230, %v774, 0
        %v810 = vsel %vm230, %v775, 0
        %v813 = vsel %vm230, %v776, 0
        %v816 = vsel %vm230, %v777, 0
        %v819 = vsel %vm230, %v778, 0
        %v822 = vsel %vm230, %v779, 0
        %v825 = vsel %vm230, %v780, 0
        %v828 = vsel %vm230, %v781, 0
        %v831 = vsel %vm230, %v782, 0
        %v834 = vsel %vm279, %v784, 0
        %836 = vmatpush.bf16.msra.mxu0 0
        %837 = vmatpush.bf16.msra.mxu0 0
        %838 = vmatpush.bf16.msra.mxu0 0
        %839 = vmatpush.bf16.msra.mxu0 0
        %840 = vmatpush.bf16.msra.mxu0 0
        %841 = vmatpush.bf16.msra.mxu0 0
        %842 = vmatpush.bf16.msra.mxu0 0
        %843 = vmatpush.bf16.msra.mxu0 %v834
        %844 = vmatmul.bf16.gmra.mxu0 %v786
        %v845 = vpop.f32.mrf.mxu0
        %v846 = vadd.f32 0.0, %v845
        %v847 = vpop.f32.mrf.mxu0
        %v848 = vadd.f32 0.0, %v847
        %849 = vmatmul.bf16.gmra.mxu0 %v789
        %v850 = vpop.f32.mrf.mxu0
        %v851 = vadd.f32 0.0, %v850
        %v852 = vpop.f32.mrf.mxu0
        %v853 = vadd.f32 0.0, %v852
        %854 = vmatmul.bf16.gmra.mxu0 %v792
        %v855 = vpop.f32.mrf.mxu0
        %v856 = vadd.f32 0.0, %v855
        %v857 = vpop.f32.mrf.mxu0
        %v858 = vadd.f32 0.0, %v857
        %859 = vmatmul.bf16.gmra.mxu0 %v795
        %v860 = vpop.f32.mrf.mxu0
        %v861 = vadd.f32 0.0, %v860
        %v862 = vpop.f32.mrf.mxu0
        %v863 = vadd.f32 0.0, %v862
        %864 = vmatmul.bf16.gmra.mxu0 %v798
        %v865 = vpop.f32.mrf.mxu0
        %v866 = vadd.f32 0.0, %v865
        %v867 = vpop.f32.mrf.mxu0
        %v868 = vadd.f32 0.0, %v867
        %869 = vmatmul.bf16.gmra.mxu0 %v801
        %v870 = vpop.f32.mrf.mxu0
        %v871 = vadd.f32 0.0, %v870
        %v872 = vpop.f32.mrf.mxu0
        %v873 = vadd.f32 0.0, %v872
        %874 = vmatmul.bf16.gmra.mxu0 %v804
        %v875 = vpop.f32.mrf.mxu0
        %v876 = vadd.f32 0.0, %v875
        %v877 = vpop.f32.mrf.mxu0
        %v878 = vadd.f32 0.0, %v877
        %879 = vmatmul.bf16.gmra.mxu0 %v807
        %v880 = vpop.f32.mrf.mxu0
        %v881 = vadd.f32 0.0, %v880
        %v882 = vpop.f32.mrf.mxu0
        %v883 = vadd.f32 0.0, %v882
        %884 = vmatmul.bf16.gmra.mxu0 %v810
        %v885 = vpop.f32.mrf.mxu0
        %v886 = vadd.f32 0.0, %v885
        %v887 = vpop.f32.mrf.mxu0
        %v888 = vadd.f32 0.0, %v887
        %889 = vmatmul.bf16.gmra.mxu0 %v813
        %v890 = vpop.f32.mrf.mxu0
        %v891 = vadd.f32 0.0, %v890
        %v892 = vpop.f32.mrf.mxu0
        %v893 = vadd.f32 0.0, %v892
        %894 = vmatmul.bf16.gmra.mxu0 %v816
        %v895 = vpop.f32.mrf.mxu0
        %v896 = vadd.f32 0.0, %v895
        %v897 = vpop.f32.mrf.mxu0
        %v898 = vadd.f32 0.0, %v897
        %899 = vmatmul.bf16.gmra.mxu0 %v819
        %v900 = vpop.f32.mrf.mxu0
        %v901 = vadd.f32 0.0, %v900
        %v902 = vpop.f32.mrf.mxu0
        %v903 = vadd.f32 0.0, %v902
        %904 = vmatmul.bf16.gmra.mxu0 %v822
        %v905 = vpop.f32.mrf.mxu0
        %v906 = vadd.f32 0.0, %v905
        %v907 = vpop.f32.mrf.mxu0
        %v908 = vadd.f32 0.0, %v907
        %909 = vmatmul.bf16.gmra.mxu0 %v825
        %v910 = vpop.f32.mrf.mxu0
        %v911 = vadd.f32 0.0, %v910
        %v912 = vpop.f32.mrf.mxu0
        %v913 = vadd.f32 0.0, %v912
        %914 = vmatmul.bf16.gmra.mxu0 %v828
        %v915 = vpop.f32.mrf.mxu0
        %v916 = vadd.f32 0.0, %v915
        %v917 = vpop.f32.mrf.mxu0
        %v918 = vadd.f32 0.0, %v917
        %919 = vmatmul.bf16.gmra.mxu0 %v831
        %v920 = vpop.f32.mrf.mxu0
        %v921 = vadd.f32 0.0, %v920
        %v922 = vpop.f32.mrf.mxu0
        %v923 = vadd.f32 0.0, %v922
        %924 = vdwg.mxu0
        %v925 = vadd.f32 %v702, %v846
        %v926 = vadd.f32 %v703, %v848
        %v927 = vadd.f32 %v704, %v851
        %v928 = vadd.f32 %v705, %v853
        %v929 = vadd.f32 %v706, %v856
        %v930 = vadd.f32 %v707, %v858
        %v931 = vadd.f32 %v708, %v861
        %v932 = vadd.f32 %v709, %v863
        %v933 = vadd.f32 %v710, %v866
        %v934 = vadd.f32 %v711, %v868
        %v935 = vadd.f32 %v712, %v871
        %v936 = vadd.f32 %v713, %v873
        %v937 = vadd.f32 %v714, %v876
        %v938 = vadd.f32 %v715, %v878
        %v939 = vadd.f32 %v716, %v881
        %v940 = vadd.f32 %v717, %v883
        %v941 = vadd.f32 %v718, %v886
        %v942 = vadd.f32 %v719, %v888
        %v943 = vadd.f32 %v720, %v891
        %v944 = vadd.f32 %v721, %v893
        %v945 = vadd.f32 %v722, %v896
        %v946 = vadd.f32 %v723, %v898
        %v947 = vadd.f32 %v724, %v901
        %v948 = vadd.f32 %v725, %v903
        %v949 = vadd.f32 %v726, %v906
        %v950 = vadd.f32 %v727, %v908
        %v951 = vadd.f32 %v728, %v911
        %v952 = vadd.f32 %v729, %v913
        %v953 = vadd.f32 %v730, %v916
        %v954 = vadd.f32 %v731, %v918
        %v955 = vadd.f32 %v732, %v921
        %v956 = vadd.f32 %v733, %v923
        %v957 = vld [vmem:[%s734 + $0x1] sm:$0xff]
        %v958 = vld [vmem:[%s734 + $0x9] sm:$0xff]
        %v959 = vld [vmem:[%s734 + $0x19] sm:$0xff]
        %v960 = vld [vmem:[%s734 + $0x21] sm:$0xff]
        %v961 = vld [vmem:[%s734 + $0x31] sm:$0xff]
        %v962 = vld [vmem:[%s734 + $0x39] sm:$0xff]
        %v963 = vld [vmem:[%s734 + $0x49] sm:$0xff]
        %v964 = vld [vmem:[%s734 + $0x51] sm:$0xff]
        %v965 = vld [vmem:[%s734 + $0x61] sm:$0xff]
        %v966 = vld [vmem:[%s734 + $0x69] sm:$0xff]
        %v967 = vld [vmem:[%s734 + $0x79] sm:$0xff]
        %v968 = vld [vmem:[%s734 + $0x81] sm:$0xff]
        %v969 = vld [vmem:[%s734 + $0x91] sm:$0xff]
        %v970 = vld [vmem:[%s734 + $0x99] sm:$0xff]
        %v971 = vld [vmem:[%s734 + $0xa9] sm:$0xff]
        %v972 = vld [vmem:[%s734 + $0xb1] sm:$0xff]
        %v973 = vld [vmem:[%s734 + $0xc1] sm:$0xff]
        %v974 = vld [vmem:[%s734 + $0xc9] sm:$0xff]
        %v975 = vld [vmem:[%s734 + $0xd9] sm:$0xff]
        %v976 = vld [vmem:[%s734 + $0xe1] sm:$0xff]
        %v977 = vld [vmem:[%s734 + $0xf1] sm:$0xff]
        %v978 = vld [vmem:[%s734 + $0xf9] sm:$0xff]
        %v979 = vld [vmem:[%s734 + $0x109] sm:$0xff]
        %v980 = vld [vmem:[%s734 + $0x111] sm:$0xff]
        %v981 = vld [vmem:[%s734 + $0x121] sm:$0xff]
        %v982 = vld [vmem:[%s734 + $0x129] sm:$0xff]
        %v983 = vld [vmem:[%s734 + $0x139] sm:$0xff]
        %v984 = vld [vmem:[%s734 + $0x141] sm:$0xff]
        %v985 = vld [vmem:[%s734 + $0x151] sm:$0xff]
        %v986 = vld [vmem:[%s734 + $0x159] sm:$0xff]
        %v987 = vld [vmem:[%s734 + $0x169] sm:$0xff]
        %v988 = vld [vmem:[%s734 + $0x171] sm:$0xff]
        %v989 = vpack.c.bf16 %v958, %v957
        %v990 = vpack.c.bf16 %v960, %v959
        %v991 = vpack.c.bf16 %v962, %v961
        %v992 = vpack.c.bf16 %v964, %v963
        %v993 = vpack.c.bf16 %v966, %v965
        %v994 = vpack.c.bf16 %v968, %v967
        %v995 = vpack.c.bf16 %v970, %v969
        %v996 = vpack.c.bf16 %v972, %v971
        %v997 = vpack.c.bf16 %v974, %v973
        %v998 = vpack.c.bf16 %v976, %v975
        %v999 = vpack.c.bf16 %v978, %v977
        %v1000 = vpack.c.bf16 %v980, %v979
        %v1001 = vpack.c.bf16 %v982, %v981
        %v1002 = vpack.c.bf16 %v984, %v983
        %v1003 = vpack.c.bf16 %v986, %v985
        %v1004 = vpack.c.bf16 %v988, %v987
        %s1005 = scalar_lea.vmem %s1, 8
        %v1006 = vld [vmem:[%s1005] sm:$0x3]
        %v1008 = vsel %vm230, %v989, 0
        %v1011 = vsel %vm230, %v990, 0
        %v1014 = vsel %vm230, %v991, 0
        %v1017 = vsel %vm230, %v992, 0
        %v1020 = vsel %vm230, %v993, 0
        %v1023 = vsel %vm230, %v994, 0
        %v1026 = vsel %vm230, %v995, 0
        %v1029 = vsel %vm230, %v996, 0
        %v1032 = vsel %vm230, %v997, 0
        %v1035 = vsel %vm230, %v998, 0
        %v1038 = vsel %vm230, %v999, 0
        %v1041 = vsel %vm230, %v1000, 0
        %v1044 = vsel %vm230, %v1001, 0
        %v1047 = vsel %vm230, %v1002, 0
        %v1050 = vsel %vm230, %v1003, 0
        %v1053 = vsel %vm230, %v1004, 0
        %v1056 = vsel %vm279, %v1006, 0
        %1058 = vmatpush.bf16.msra.mxu0 0
        %1059 = vmatpush.bf16.msra.mxu0 0
        %1060 = vmatpush.bf16.msra.mxu0 0
        %1061 = vmatpush.bf16.msra.mxu0 0
        %1062 = vmatpush.bf16.msra.mxu0 0
        %1063 = vmatpush.bf16.msra.mxu0 0
        %1064 = vmatpush.bf16.msra.mxu0 0
        %1065 = vmatpush.bf16.msra.mxu0 %v1056
        %1066 = vmatmul.bf16.gmra.mxu0 %v1008
        %v1067 = vpop.f32.mrf.mxu0
        %v1068 = vadd.f32 0.0, %v1067
        %v1069 = vpop.f32.mrf.mxu0
        %v1070 = vadd.f32 0.0, %v1069
        %1071 = vmatmul.bf16.gmra.mxu0 %v1011
        %v1072 = vpop.f32.mrf.mxu0
        %v1073 = vadd.f32 0.0, %v1072
        %v1074 = vpop.f32.mrf.mxu0
        %v1075 = vadd.f32 0.0, %v1074
        %1076 = vmatmul.bf16.gmra.mxu0 %v1014
        %v1077 = vpop.f32.mrf.mxu0
        %v1078 = vadd.f32 0.0, %v1077
        %v1079 = vpop.f32.mrf.mxu0
        %v1080 = vadd.f32 0.0, %v1079
        %1081 = vmatmul.bf16.gmra.mxu0 %v1017
        %v1082 = vpop.f32.mrf.mxu0
        %v1083 = vadd.f32 0.0, %v1082
        %v1084 = vpop.f32.mrf.mxu0
        %v1085 = vadd.f32 0.0, %v1084
        %1086 = vmatmul.bf16.gmra.mxu0 %v1020
        %v1087 = vpop.f32.mrf.mxu0
        %v1088 = vadd.f32 0.0, %v1087
        %v1089 = vpop.f32.mrf.mxu0
        %v1090 = vadd.f32 0.0, %v1089
        %1091 = vmatmul.bf16.gmra.mxu0 %v1023
        %v1092 = vpop.f32.mrf.mxu0
        %v1093 = vadd.f32 0.0, %v1092
        %v1094 = vpop.f32.mrf.mxu0
        %v1095 = vadd.f32 0.0, %v1094
        %1096 = vmatmul.bf16.gmra.mxu0 %v1026
        %v1097 = vpop.f32.mrf.mxu0
        %v1098 = vadd.f32 0.0, %v1097
        %v1099 = vpop.f32.mrf.mxu0
        %v1100 = vadd.f32 0.0, %v1099
        %1101 = vmatmul.bf16.gmra.mxu0 %v1029
        %v1102 = vpop.f32.mrf.mxu0
        %v1103 = vadd.f32 0.0, %v1102
        %v1104 = vpop.f32.mrf.mxu0
        %v1105 = vadd.f32 0.0, %v1104
        %1106 = vmatmul.bf16.gmra.mxu0 %v1032
        %v1107 = vpop.f32.mrf.mxu0
        %v1108 = vadd.f32 0.0, %v1107
        %v1109 = vpop.f32.mrf.mxu0
        %v1110 = vadd.f32 0.0, %v1109
        %1111 = vmatmul.bf16.gmra.mxu0 %v1035
        %v1112 = vpop.f32.mrf.mxu0
        %v1113 = vadd.f32 0.0, %v1112
        %v1114 = vpop.f32.mrf.mxu0
        %v1115 = vadd.f32 0.0, %v1114
        %1116 = vmatmul.bf16.gmra.mxu0 %v1038
        %v1117 = vpop.f32.mrf.mxu0
        %v1118 = vadd.f32 0.0, %v1117
        %v1119 = vpop.f32.mrf.mxu0
        %v1120 = vadd.f32 0.0, %v1119
        %1121 = vmatmul.bf16.gmra.mxu0 %v1041
        %v1122 = vpop.f32.mrf.mxu0
        %v1123 = vadd.f32 0.0, %v1122
        %v1124 = vpop.f32.mrf.mxu0
        %v1125 = vadd.f32 0.0, %v1124
        %1126 = vmatmul.bf16.gmra.mxu0 %v1044
        %v1127 = vpop.f32.mrf.mxu0
        %v1128 = vadd.f32 0.0, %v1127
        %v1129 = vpop.f32.mrf.mxu0
        %v1130 = vadd.f32 0.0, %v1129
        %1131 = vmatmul.bf16.gmra.mxu0 %v1047
        %v1132 = vpop.f32.mrf.mxu0
        %v1133 = vadd.f32 0.0, %v1132
        %v1134 = vpop.f32.mrf.mxu0
        %v1135 = vadd.f32 0.0, %v1134
        %1136 = vmatmul.bf16.gmra.mxu0 %v1050
        %v1137 = vpop.f32.mrf.mxu0
        %v1138 = vadd.f32 0.0, %v1137
        %v1139 = vpop.f32.mrf.mxu0
        %v1140 = vadd.f32 0.0, %v1139
        %1141 = vmatmul.bf16.gmra.mxu0 %v1053
        %v1142 = vpop.f32.mrf.mxu0
        %v1143 = vadd.f32 0.0, %v1142
        %v1144 = vpop.f32.mrf.mxu0
        %v1145 = vadd.f32 0.0, %v1144
        %1146 = vdwg.mxu0
        %v1147 = vadd.f32 %v925, %v1068
        %v1148 = vadd.f32 %v926, %v1070
        %v1149 = vadd.f32 %v927, %v1073
        %v1150 = vadd.f32 %v928, %v1075
        %v1151 = vadd.f32 %v929, %v1078
        %v1152 = vadd.f32 %v930, %v1080
        %v1153 = vadd.f32 %v931, %v1083
        %v1154 = vadd.f32 %v932, %v1085
        %v1155 = vadd.f32 %v933, %v1088
        %v1156 = vadd.f32 %v934, %v1090
        %v1157 = vadd.f32 %v935, %v1093
        %v1158 = vadd.f32 %v936, %v1095
        %v1159 = vadd.f32 %v937, %v1098
        %v1160 = vadd.f32 %v938, %v1100
        %v1161 = vadd.f32 %v939, %v1103
        %v1162 = vadd.f32 %v940, %v1105
        %v1163 = vadd.f32 %v941, %v1108
        %v1164 = vadd.f32 %v942, %v1110
        %v1165 = vadd.f32 %v943, %v1113
        %v1166 = vadd.f32 %v944, %v1115
        %v1167 = vadd.f32 %v945, %v1118
        %v1168 = vadd.f32 %v946, %v1120
        %v1169 = vadd.f32 %v947, %v1123
        %v1170 = vadd.f32 %v948, %v1125
        %v1171 = vadd.f32 %v949, %v1128
        %v1172 = vadd.f32 %v950, %v1130
        %v1173 = vadd.f32 %v951, %v1133
        %v1174 = vadd.f32 %v952, %v1135
        %v1175 = vadd.f32 %v953, %v1138
        %v1176 = vadd.f32 %v954, %v1140
        %v1177 = vadd.f32 %v955, %v1143
        %v1178 = vadd.f32 %v956, %v1145
        %v1179 = vld [vmem:[%s734 + $0x2] sm:$0xff]
        %v1180 = vld [vmem:[%s734 + $0xa] sm:$0xff]
        %v1181 = vld [vmem:[%s734 + $0x1a] sm:$0xff]
        %v1182 = vld [vmem:[%s734 + $0x22] sm:$0xff]
        %v1183 = vld [vmem:[%s734 + $0x32] sm:$0xff]
        %v1184 = vld [vmem:[%s734 + $0x3a] sm:$0xff]
        %v1185 = vld [vmem:[%s734 + $0x4a] sm:$0xff]
        %v1186 = vld [vmem:[%s734 + $0x52] sm:$0xff]
        %v1187 = vld [vmem:[%s734 + $0x62] sm:$0xff]
        %v1188 = vld [vmem:[%s734 + $0x6a] sm:$0xff]
        %v1189 = vld [vmem:[%s734 + $0x7a] sm:$0xff]
        %v1190 = vld [vmem:[%s734 + $0x82] sm:$0xff]
        %v1191 = vld [vmem:[%s734 + $0x92] sm:$0xff]
        %v1192 = vld [vmem:[%s734 + $0x9a] sm:$0xff]
        %v1193 = vld [vmem:[%s734 + $0xaa] sm:$0xff]
        %v1194 = vld [vmem:[%s734 + $0xb2] sm:$0xff]
        %v1195 = vld [vmem:[%s734 + $0xc2] sm:$0xff]
        %v1196 = vld [vmem:[%s734 + $0xca] sm:$0xff]
        %v1197 = vld [vmem:[%s734 + $0xda] sm:$0xff]
        %v1198 = vld [vmem:[%s734 + $0xe2] sm:$0xff]
        %v1199 = vld [vmem:[%s734 + $0xf2] sm:$0xff]
        %v1200 = vld [vmem:[%s734 + $0xfa] sm:$0xff]
        %v1201 = vld [vmem:[%s734 + $0x10a] sm:$0xff]
        %v1202 = vld [vmem:[%s734 + $0x112] sm:$0xff]
        %v1203 = vld [vmem:[%s734 + $0x122] sm:$0xff]
        %v1204 = vld [vmem:[%s734 + $0x12a] sm:$0xff]
        %v1205 = vld [vmem:[%s734 + $0x13a] sm:$0xff]
        %v1206 = vld [vmem:[%s734 + $0x142] sm:$0xff]
        %v1207 = vld [vmem:[%s734 + $0x152] sm:$0xff]
        %v1208 = vld [vmem:[%s734 + $0x15a] sm:$0xff]
        %v1209 = vld [vmem:[%s734 + $0x16a] sm:$0xff]
        %v1210 = vld [vmem:[%s734 + $0x172] sm:$0xff]
        %v1211 = vpack.c.bf16 %v1180, %v1179
        %v1212 = vpack.c.bf16 %v1182, %v1181
        %v1213 = vpack.c.bf16 %v1184, %v1183
        %v1214 = vpack.c.bf16 %v1186, %v1185
        %v1215 = vpack.c.bf16 %v1188, %v1187
        %v1216 = vpack.c.bf16 %v1190, %v1189
        %v1217 = vpack.c.bf16 %v1192, %v1191
        %v1218 = vpack.c.bf16 %v1194, %v1193
        %v1219 = vpack.c.bf16 %v1196, %v1195
        %v1220 = vpack.c.bf16 %v1198, %v1197
        %v1221 = vpack.c.bf16 %v1200, %v1199
        %v1222 = vpack.c.bf16 %v1202, %v1201
        %v1223 = vpack.c.bf16 %v1204, %v1203
        %v1224 = vpack.c.bf16 %v1206, %v1205
        %v1225 = vpack.c.bf16 %v1208, %v1207
        %v1226 = vpack.c.bf16 %v1210, %v1209
        %s1227 = scalar_lea.vmem %s1, 10
        %v1228 = vld [vmem:[%s1227] sm:$0x3]
        %v1230 = vsel %vm230, %v1211, 0
        %v1233 = vsel %vm230, %v1212, 0
        %v1236 = vsel %vm230, %v1213, 0
        %v1239 = vsel %vm230, %v1214, 0
        %v1242 = vsel %vm230, %v1215, 0
        %v1245 = vsel %vm230, %v1216, 0
        %v1248 = vsel %vm230, %v1217, 0
        %v1251 = vsel %vm230, %v1218, 0
        %v1254 = vsel %vm230, %v1219, 0
        %v1257 = vsel %vm230, %v1220, 0
        %v1260 = vsel %vm230, %v1221, 0
        %v1263 = vsel %vm230, %v1222, 0
        %v1266 = vsel %vm230, %v1223, 0
        %v1269 = vsel %vm230, %v1224, 0
        %v1272 = vsel %vm230, %v1225, 0
        %v1275 = vsel %vm230, %v1226, 0
        %v1278 = vsel %vm279, %v1228, 0
        %1280 = vmatpush.bf16.msra.mxu0 0
        %1281 = vmatpush.bf16.msra.mxu0 0
        %1282 = vmatpush.bf16.msra.mxu0 0
        %1283 = vmatpush.bf16.msra.mxu0 0
        %1284 = vmatpush.bf16.msra.mxu0 0
        %1285 = vmatpush.bf16.msra.mxu0 0
        %1286 = vmatpush.bf16.msra.mxu0 0
        %1287 = vmatpush.bf16.msra.mxu0 %v1278
        %1288 = vmatmul.bf16.gmra.mxu0 %v1230
        %v1289 = vpop.f32.mrf.mxu0
        %v1290 = vadd.f32 0.0, %v1289
        %v1291 = vpop.f32.mrf.mxu0
        %v1292 = vadd.f32 0.0, %v1291
        %1293 = vmatmul.bf16.gmra.mxu0 %v1233
        %v1294 = vpop.f32.mrf.mxu0
        %v1295 = vadd.f32 0.0, %v1294
        %v1296 = vpop.f32.mrf.mxu0
        %v1297 = vadd.f32 0.0, %v1296
        %1298 = vmatmul.bf16.gmra.mxu0 %v1236
        %v1299 = vpop.f32.mrf.mxu0
        %v1300 = vadd.f32 0.0, %v1299
        %v1301 = vpop.f32.mrf.mxu0
        %v1302 = vadd.f32 0.0, %v1301
        %1303 = vmatmul.bf16.gmra.mxu0 %v1239
        %v1304 = vpop.f32.mrf.mxu0
        %v1305 = vadd.f32 0.0, %v1304
        %v1306 = vpop.f32.mrf.mxu0
        %v1307 = vadd.f32 0.0, %v1306
        %1308 = vmatmul.bf16.gmra.mxu0 %v1242
        %v1309 = vpop.f32.mrf.mxu0
        %v1310 = vadd.f32 0.0, %v1309
        %v1311 = vpop.f32.mrf.mxu0
        %v1312 = vadd.f32 0.0, %v1311
        %1313 = vmatmul.bf16.gmra.mxu0 %v1245
        %v1314 = vpop.f32.mrf.mxu0
        %v1315 = vadd.f32 0.0, %v1314
        %v1316 = vpop.f32.mrf.mxu0
        %v1317 = vadd.f32 0.0, %v1316
        %1318 = vmatmul.bf16.gmra.mxu0 %v1248
        %v1319 = vpop.f32.mrf.mxu0
        %v1320 = vadd.f32 0.0, %v1319
        %v1321 = vpop.f32.mrf.mxu0
        %v1322 = vadd.f32 0.0, %v1321
        %1323 = vmatmul.bf16.gmra.mxu0 %v1251
        %v1324 = vpop.f32.mrf.mxu0
        %v1325 = vadd.f32 0.0, %v1324
        %v1326 = vpop.f32.mrf.mxu0
        %v1327 = vadd.f32 0.0, %v1326
        %1328 = vmatmul.bf16.gmra.mxu0 %v1254
        %v1329 = vpop.f32.mrf.mxu0
        %v1330 = vadd.f32 0.0, %v1329
        %v1331 = vpop.f32.mrf.mxu0
        %v1332 = vadd.f32 0.0, %v1331
        %1333 = vmatmul.bf16.gmra.mxu0 %v1257
        %v1334 = vpop.f32.mrf.mxu0
        %v1335 = vadd.f32 0.0, %v1334
        %v1336 = vpop.f32.mrf.mxu0
        %v1337 = vadd.f32 0.0, %v1336
        %1338 = vmatmul.bf16.gmra.mxu0 %v1260
        %v1339 = vpop.f32.mrf.mxu0
        %v1340 = vadd.f32 0.0, %v1339
        %v1341 = vpop.f32.mrf.mxu0
        %v1342 = vadd.f32 0.0, %v1341
        %1343 = vmatmul.bf16.gmra.mxu0 %v1263
        %v1344 = vpop.f32.mrf.mxu0
        %v1345 = vadd.f32 0.0, %v1344
        %v1346 = vpop.f32.mrf.mxu0
        %v1347 = vadd.f32 0.0, %v1346
        %1348 = vmatmul.bf16.gmra.mxu0 %v1266
        %v1349 = vpop.f32.mrf.mxu0
        %v1350 = vadd.f32 0.0, %v1349
        %v1351 = vpop.f32.mrf.mxu0
        %v1352 = vadd.f32 0.0, %v1351
        %1353 = vmatmul.bf16.gmra.mxu0 %v1269
        %v1354 = vpop.f32.mrf.mxu0
        %v1355 = vadd.f32 0.0, %v1354
        %v1356 = vpop.f32.mrf.mxu0
        %v1357 = vadd.f32 0.0, %v1356
        %1358 = vmatmul.bf16.gmra.mxu0 %v1272
        %v1359 = vpop.f32.mrf.mxu0
        %v1360 = vadd.f32 0.0, %v1359
        %v1361 = vpop.f32.mrf.mxu0
        %v1362 = vadd.f32 0.0, %v1361
        %1363 = vmatmul.bf16.gmra.mxu0 %v1275
        %v1364 = vpop.f32.mrf.mxu0
        %v1365 = vadd.f32 0.0, %v1364
        %v1366 = vpop.f32.mrf.mxu0
        %v1367 = vadd.f32 0.0, %v1366
        %1368 = vdwg.mxu0
        %v1369 = vadd.f32 %v1147, %v1290
        %v1370 = vadd.f32 %v1148, %v1292
        %v1371 = vadd.f32 %v1149, %v1295
        %v1372 = vadd.f32 %v1150, %v1297
        %v1373 = vadd.f32 %v1151, %v1300
        %v1374 = vadd.f32 %v1152, %v1302
        %v1375 = vadd.f32 %v1153, %v1305
        %v1376 = vadd.f32 %v1154, %v1307
        %v1377 = vadd.f32 %v1155, %v1310
        %v1378 = vadd.f32 %v1156, %v1312
        %v1379 = vadd.f32 %v1157, %v1315
        %v1380 = vadd.f32 %v1158, %v1317
        %v1381 = vadd.f32 %v1159, %v1320
        %v1382 = vadd.f32 %v1160, %v1322
        %v1383 = vadd.f32 %v1161, %v1325
        %v1384 = vadd.f32 %v1162, %v1327
        %v1385 = vadd.f32 %v1163, %v1330
        %v1386 = vadd.f32 %v1164, %v1332
        %v1387 = vadd.f32 %v1165, %v1335
        %v1388 = vadd.f32 %v1166, %v1337
        %v1389 = vadd.f32 %v1167, %v1340
        %v1390 = vadd.f32 %v1168, %v1342
        %v1391 = vadd.f32 %v1169, %v1345
        %v1392 = vadd.f32 %v1170, %v1347
        %v1393 = vadd.f32 %v1171, %v1350
        %v1394 = vadd.f32 %v1172, %v1352
        %v1395 = vadd.f32 %v1173, %v1355
        %v1396 = vadd.f32 %v1174, %v1357
        %v1397 = vadd.f32 %v1175, %v1360
        %v1398 = vadd.f32 %v1176, %v1362
        %v1399 = vadd.f32 %v1177, %v1365
        %v1400 = vadd.f32 %v1178, %v1367
        %s1401 = scalar_lea.vmem %s129, 48
        %v1402 = vld [vmem:[%s1401] sm:$0xff]
        %v1403 = vld [vmem:[%s1401 + $0x8] sm:$0xff]
        %v1404 = vld [vmem:[%s1401 + $0x18] sm:$0xff]
        %v1405 = vld [vmem:[%s1401 + $0x20] sm:$0xff]
        %v1406 = vld [vmem:[%s1401 + $0x30] sm:$0xff]
        %v1407 = vld [vmem:[%s1401 + $0x38] sm:$0xff]
        %v1408 = vld [vmem:[%s1401 + $0x48] sm:$0xff]
        %v1409 = vld [vmem:[%s1401 + $0x50] sm:$0xff]
        %v1410 = vld [vmem:[%s1401 + $0x60] sm:$0xff]
        %v1411 = vld [vmem:[%s1401 + $0x68] sm:$0xff]
        %v1412 = vld [vmem:[%s1401 + $0x78] sm:$0xff]
        %v1413 = vld [vmem:[%s1401 + $0x80] sm:$0xff]
        %v1414 = vld [vmem:[%s1401 + $0x90] sm:$0xff]
        %v1415 = vld [vmem:[%s1401 + $0x98] sm:$0xff]
        %v1416 = vld [vmem:[%s1401 + $0xa8] sm:$0xff]
        %v1417 = vld [vmem:[%s1401 + $0xb0] sm:$0xff]
        %v1418 = vld [vmem:[%s1401 + $0xc0] sm:$0xff]
        %v1419 = vld [vmem:[%s1401 + $0xc8] sm:$0xff]
        %v1420 = vld [vmem:[%s1401 + $0xd8] sm:$0xff]
        %v1421 = vld [vmem:[%s1401 + $0xe0] sm:$0xff]
        %v1422 = vld [vmem:[%s1401 + $0xf0] sm:$0xff]
        %v1423 = vld [vmem:[%s1401 + $0xf8] sm:$0xff]
        %v1424 = vld [vmem:[%s1401 + $0x108] sm:$0xff]
        %v1425 = vld [vmem:[%s1401 + $0x110] sm:$0xff]
        %v1426 = vld [vmem:[%s1401 + $0x120] sm:$0xff]
        %v1427 = vld [vmem:[%s1401 + $0x128] sm:$0xff]
        %v1428 = vld [vmem:[%s1401 + $0x138] sm:$0xff]
        %v1429 = vld [vmem:[%s1401 + $0x140] sm:$0xff]
        %v1430 = vld [vmem:[%s1401 + $0x150] sm:$0xff]
        %v1431 = vld [vmem:[%s1401 + $0x158] sm:$0xff]
        %v1432 = vld [vmem:[%s1401 + $0x168] sm:$0xff]
        %v1433 = vld [vmem:[%s1401 + $0x170] sm:$0xff]
        %v1434 = vpack.c.bf16 %v1403, %v1402
        %v1435 = vpack.c.bf16 %v1405, %v1404
        %v1436 = vpack.c.bf16 %v1407, %v1406
        %v1437 = vpack.c.bf16 %v1409, %v1408
        %v1438 = vpack.c.bf16 %v1411, %v1410
        %v1439 = vpack.c.bf16 %v1413, %v1412
        %v1440 = vpack.c.bf16 %v1415, %v1414
        %v1441 = vpack.c.bf16 %v1417, %v1416
        %v1442 = vpack.c.bf16 %v1419, %v1418
        %v1443 = vpack.c.bf16 %v1421, %v1420
        %v1444 = vpack.c.bf16 %v1423, %v1422
        %v1445 = vpack.c.bf16 %v1425, %v1424
        %v1446 = vpack.c.bf16 %v1427, %v1426
        %v1447 = vpack.c.bf16 %v1429, %v1428
        %v1448 = vpack.c.bf16 %v1431, %v1430
        %v1449 = vpack.c.bf16 %v1433, %v1432
        %s1450 = scalar_lea.vmem %s1, 12
        %v1451 = vld [vmem:[%s1450] sm:$0x3]
        %v1453 = vsel %vm230, %v1434, 0
        %v1456 = vsel %vm230, %v1435, 0
        %v1459 = vsel %vm230, %v1436, 0
        %v1462 = vsel %vm230, %v1437, 0
        %v1465 = vsel %vm230, %v1438, 0
        %v1468 = vsel %vm230, %v1439, 0
        %v1471 = vsel %vm230, %v1440, 0
        %v1474 = vsel %vm230, %v1441, 0
        %v1477 = vsel %vm230, %v1442, 0
        %v1480 = vsel %vm230, %v1443, 0
        %v1483 = vsel %vm230, %v1444, 0
        %v1486 = vsel %vm230, %v1445, 0
        %v1489 = vsel %vm230, %v1446, 0
        %v1492 = vsel %vm230, %v1447, 0
        %v1495 = vsel %vm230, %v1448, 0
        %v1498 = vsel %vm230, %v1449, 0
        %v1501 = vsel %vm279, %v1451, 0
        %1503 = vmatpush.bf16.msra.mxu0 0
        %1504 = vmatpush.bf16.msra.mxu0 0
        %1505 = vmatpush.bf16.msra.mxu0 0
        %1506 = vmatpush.bf16.msra.mxu0 0
        %1507 = vmatpush.bf16.msra.mxu0 0
        %1508 = vmatpush.bf16.msra.mxu0 0
        %1509 = vmatpush.bf16.msra.mxu0 0
        %1510 = vmatpush.bf16.msra.mxu0 %v1501
        %1511 = vmatmul.bf16.gmra.mxu0 %v1453
        %v1512 = vpop.f32.mrf.mxu0
        %v1513 = vadd.f32 0.0, %v1512
        %v1514 = vpop.f32.mrf.mxu0
        %v1515 = vadd.f32 0.0, %v1514
        %1516 = vmatmul.bf16.gmra.mxu0 %v1456
        %v1517 = vpop.f32.mrf.mxu0
        %v1518 = vadd.f32 0.0, %v1517
        %v1519 = vpop.f32.mrf.mxu0
        %v1520 = vadd.f32 0.0, %v1519
        %1521 = vmatmul.bf16.gmra.mxu0 %v1459
        %v1522 = vpop.f32.mrf.mxu0
        %v1523 = vadd.f32 0.0, %v1522
        %v1524 = vpop.f32.mrf.mxu0
        %v1525 = vadd.f32 0.0, %v1524
        %1526 = vmatmul.bf16.gmra.mxu0 %v1462
        %v1527 = vpop.f32.mrf.mxu0
        %v1528 = vadd.f32 0.0, %v1527
        %v1529 = vpop.f32.mrf.mxu0
        %v1530 = vadd.f32 0.0, %v1529
        %1531 = vmatmul.bf16.gmra.mxu0 %v1465
        %v1532 = vpop.f32.mrf.mxu0
        %v1533 = vadd.f32 0.0, %v1532
        %v1534 = vpop.f32.mrf.mxu0
        %v1535 = vadd.f32 0.0, %v1534
        %1536 = vmatmul.bf16.gmra.mxu0 %v1468
        %v1537 = vpop.f32.mrf.mxu0
        %v1538 = vadd.f32 0.0, %v1537
        %v1539 = vpop.f32.mrf.mxu0
        %v1540 = vadd.f32 0.0, %v1539
        %1541 = vmatmul.bf16.gmra.mxu0 %v1471
        %v1542 = vpop.f32.mrf.mxu0
        %v1543 = vadd.f32 0.0, %v1542
        %v1544 = vpop.f32.mrf.mxu0
        %v1545 = vadd.f32 0.0, %v1544
        %1546 = vmatmul.bf16.gmra.mxu0 %v1474
        %v1547 = vpop.f32.mrf.mxu0
        %v1548 = vadd.f32 0.0, %v1547
        %v1549 = vpop.f32.mrf.mxu0
        %v1550 = vadd.f32 0.0, %v1549
        %1551 = vmatmul.bf16.gmra.mxu0 %v1477
        %v1552 = vpop.f32.mrf.mxu0
        %v1553 = vadd.f32 0.0, %v1552
        %v1554 = vpop.f32.mrf.mxu0
        %v1555 = vadd.f32 0.0, %v1554
        %1556 = vmatmul.bf16.gmra.mxu0 %v1480
        %v1557 = vpop.f32.mrf.mxu0
        %v1558 = vadd.f32 0.0, %v1557
        %v1559 = vpop.f32.mrf.mxu0
        %v1560 = vadd.f32 0.0, %v1559
        %1561 = vmatmul.bf16.gmra.mxu0 %v1483
        %v1562 = vpop.f32.mrf.mxu0
        %v1563 = vadd.f32 0.0, %v1562
        %v1564 = vpop.f32.mrf.mxu0
        %v1565 = vadd.f32 0.0, %v1564
        %1566 = vmatmul.bf16.gmra.mxu0 %v1486
        %v1567 = vpop.f32.mrf.mxu0
        %v1568 = vadd.f32 0.0, %v1567
        %v1569 = vpop.f32.mrf.mxu0
        %v1570 = vadd.f32 0.0, %v1569
        %1571 = vmatmul.bf16.gmra.mxu0 %v1489
        %v1572 = vpop.f32.mrf.mxu0
        %v1573 = vadd.f32 0.0, %v1572
        %v1574 = vpop.f32.mrf.mxu0
        %v1575 = vadd.f32 0.0, %v1574
        %1576 = vmatmul.bf16.gmra.mxu0 %v1492
        %v1577 = vpop.f32.mrf.mxu0
        %v1578 = vadd.f32 0.0, %v1577
        %v1579 = vpop.f32.mrf.mxu0
        %v1580 = vadd.f32 0.0, %v1579
        %1581 = vmatmul.bf16.gmra.mxu0 %v1495
        %v1582 = vpop.f32.mrf.mxu0
        %v1583 = vadd.f32 0.0, %v1582
        %v1584 = vpop.f32.mrf.mxu0
        %v1585 = vadd.f32 0.0, %v1584
        %1586 = vmatmul.bf16.gmra.mxu0 %v1498
        %v1587 = vpop.f32.mrf.mxu0
        %v1588 = vadd.f32 0.0, %v1587
        %v1589 = vpop.f32.mrf.mxu0
        %v1590 = vadd.f32 0.0, %v1589
        %1591 = vdwg.mxu0
        %v1592 = vadd.f32 %v1369, %v1513
        %v1593 = vadd.f32 %v1370, %v1515
        %v1594 = vadd.f32 %v1371, %v1518
        %v1595 = vadd.f32 %v1372, %v1520
        %v1596 = vadd.f32 %v1373, %v1523
        %v1597 = vadd.f32 %v1374, %v1525
        %v1598 = vadd.f32 %v1375, %v1528
        %v1599 = vadd.f32 %v1376, %v1530
        %v1600 = vadd.f32 %v1377, %v1533
        %v1601 = vadd.f32 %v1378, %v1535
        %v1602 = vadd.f32 %v1379, %v1538
        %v1603 = vadd.f32 %v1380, %v1540
        %v1604 = vadd.f32 %v1381, %v1543
        %v1605 = vadd.f32 %v1382, %v1545
        %v1606 = vadd.f32 %v1383, %v1548
        %v1607 = vadd.f32 %v1384, %v1550
        %v1608 = vadd.f32 %v1385, %v1553
        %v1609 = vadd.f32 %v1386, %v1555
        %v1610 = vadd.f32 %v1387, %v1558
        %v1611 = vadd.f32 %v1388, %v1560
        %v1612 = vadd.f32 %v1389, %v1563
        %v1613 = vadd.f32 %v1390, %v1565
        %v1614 = vadd.f32 %v1391, %v1568
        %v1615 = vadd.f32 %v1392, %v1570
        %v1616 = vadd.f32 %v1393, %v1573
        %v1617 = vadd.f32 %v1394, %v1575
        %v1618 = vadd.f32 %v1395, %v1578
        %v1619 = vadd.f32 %v1396, %v1580
        %v1620 = vadd.f32 %v1397, %v1583
        %v1621 = vadd.f32 %v1398, %v1585
        %v1622 = vadd.f32 %v1399, %v1588
        %v1623 = vadd.f32 %v1400, %v1590
        %v1624 = vld [vmem:[%s1401 + $0x1] sm:$0xff]
        %v1625 = vld [vmem:[%s1401 + $0x9] sm:$0xff]
        %v1626 = vld [vmem:[%s1401 + $0x19] sm:$0xff]
        %v1627 = vld [vmem:[%s1401 + $0x21] sm:$0xff]
        %v1628 = vld [vmem:[%s1401 + $0x31] sm:$0xff]
        %v1629 = vld [vmem:[%s1401 + $0x39] sm:$0xff]
        %v1630 = vld [vmem:[%s1401 + $0x49] sm:$0xff]
        %v1631 = vld [vmem:[%s1401 + $0x51] sm:$0xff]
        %v1632 = vld [vmem:[%s1401 + $0x61] sm:$0xff]
        %v1633 = vld [vmem:[%s1401 + $0x69] sm:$0xff]
        %v1634 = vld [vmem:[%s1401 + $0x79] sm:$0xff]
        %v1635 = vld [vmem:[%s1401 + $0x81] sm:$0xff]
        %v1636 = vld [vmem:[%s1401 + $0x91] sm:$0xff]
        %v1637 = vld [vmem:[%s1401 + $0x99] sm:$0xff]
        %v1638 = vld [vmem:[%s1401 + $0xa9] sm:$0xff]
        %v1639 = vld [vmem:[%s1401 + $0xb1] sm:$0xff]
        %v1640 = vld [vmem:[%s1401 + $0xc1] sm:$0xff]
        %v1641 = vld [vmem:[%s1401 + $0xc9] sm:$0xff]
        %v1642 = vld [vmem:[%s1401 + $0xd9] sm:$0xff]
        %v1643 = vld [vmem:[%s1401 + $0xe1] sm:$0xff]
        %v1644 = vld [vmem:[%s1401 + $0xf1] sm:$0xff]
        %v1645 = vld [vmem:[%s1401 + $0xf9] sm:$0xff]
        %v1646 = vld [vmem:[%s1401 + $0x109] sm:$0xff]
        %v1647 = vld [vmem:[%s1401 + $0x111] sm:$0xff]
        %v1648 = vld [vmem:[%s1401 + $0x121] sm:$0xff]
        %v1649 = vld [vmem:[%s1401 + $0x129] sm:$0xff]
        %v1650 = vld [vmem:[%s1401 + $0x139] sm:$0xff]
        %v1651 = vld [vmem:[%s1401 + $0x141] sm:$0xff]
        %v1652 = vld [vmem:[%s1401 + $0x151] sm:$0xff]
        %v1653 = vld [vmem:[%s1401 + $0x159] sm:$0xff]
        %v1654 = vld [vmem:[%s1401 + $0x169] sm:$0xff]
        %v1655 = vld [vmem:[%s1401 + $0x171] sm:$0xff]
        %v1656 = vpack.c.bf16 %v1625, %v1624
        %v1657 = vpack.c.bf16 %v1627, %v1626
        %v1658 = vpack.c.bf16 %v1629, %v1628
        %v1659 = vpack.c.bf16 %v1631, %v1630
        %v1660 = vpack.c.bf16 %v1633, %v1632
        %v1661 = vpack.c.bf16 %v1635, %v1634
        %v1662 = vpack.c.bf16 %v1637, %v1636
        %v1663 = vpack.c.bf16 %v1639, %v1638
        %v1664 = vpack.c.bf16 %v1641, %v1640
        %v1665 = vpack.c.bf16 %v1643, %v1642
        %v1666 = vpack.c.bf16 %v1645, %v1644
        %v1667 = vpack.c.bf16 %v1647, %v1646
        %v1668 = vpack.c.bf16 %v1649, %v1648
        %v1669 = vpack.c.bf16 %v1651, %v1650
        %v1670 = vpack.c.bf16 %v1653, %v1652
        %v1671 = vpack.c.bf16 %v1655, %v1654
        %s1672 = scalar_lea.vmem %s1, 14
        %v1673 = vld [vmem:[%s1672] sm:$0x3]
        %v1675 = vsel %vm230, %v1656, 0
        %v1678 = vsel %vm230, %v1657, 0
        %v1681 = vsel %vm230, %v1658, 0
        %v1684 = vsel %vm230, %v1659, 0
        %v1687 = vsel %vm230, %v1660, 0
        %v1690 = vsel %vm230, %v1661, 0
        %v1693 = vsel %vm230, %v1662, 0
        %v1696 = vsel %vm230, %v1663, 0
        %v1699 = vsel %vm230, %v1664, 0
        %v1702 = vsel %vm230, %v1665, 0
        %v1705 = vsel %vm230, %v1666, 0
        %v1708 = vsel %vm230, %v1667, 0
        %v1711 = vsel %vm230, %v1668, 0
        %v1714 = vsel %vm230, %v1669, 0
        %v1717 = vsel %vm230, %v1670, 0
        %v1720 = vsel %vm230, %v1671, 0
        %v1723 = vsel %vm279, %v1673, 0
        %1725 = vmatpush.bf16.msra.mxu0 0
        %1726 = vmatpush.bf16.msra.mxu0 0
        %1727 = vmatpush.bf16.msra.mxu0 0
        %1728 = vmatpush.bf16.msra.mxu0 0
        %1729 = vmatpush.bf16.msra.mxu0 0
        %1730 = vmatpush.bf16.msra.mxu0 0
        %1731 = vmatpush.bf16.msra.mxu0 0
        %1732 = vmatpush.bf16.msra.mxu0 %v1723
        %1733 = vmatmul.bf16.gmra.mxu0 %v1675
        %v1734 = vpop.f32.mrf.mxu0
        %v1735 = vadd.f32 0.0, %v1734
        %v1736 = vpop.f32.mrf.mxu0
        %v1737 = vadd.f32 0.0, %v1736
        %1738 = vmatmul.bf16.gmra.mxu0 %v1678
        %v1739 = vpop.f32.mrf.mxu0
        %v1740 = vadd.f32 0.0, %v1739
        %v1741 = vpop.f32.mrf.mxu0
        %v1742 = vadd.f32 0.0, %v1741
        %1743 = vmatmul.bf16.gmra.mxu0 %v1681
        %v1744 = vpop.f32.mrf.mxu0
        %v1745 = vadd.f32 0.0, %v1744
        %v1746 = vpop.f32.mrf.mxu0
        %v1747 = vadd.f32 0.0, %v1746
        %1748 = vmatmul.bf16.gmra.mxu0 %v1684
        %v1749 = vpop.f32.mrf.mxu0
        %v1750 = vadd.f32 0.0, %v1749
        %v1751 = vpop.f32.mrf.mxu0
        %v1752 = vadd.f32 0.0, %v1751
        %1753 = vmatmul.bf16.gmra.mxu0 %v1687
        %v1754 = vpop.f32.mrf.mxu0
        %v1755 = vadd.f32 0.0, %v1754
        %v1756 = vpop.f32.mrf.mxu0
        %v1757 = vadd.f32 0.0, %v1756
        %1758 = vmatmul.bf16.gmra.mxu0 %v1690
        %v1759 = vpop.f32.mrf.mxu0
        %v1760 = vadd.f32 0.0, %v1759
        %v1761 = vpop.f32.mrf.mxu0
        %v1762 = vadd.f32 0.0, %v1761
        %1763 = vmatmul.bf16.gmra.mxu0 %v1693
        %v1764 = vpop.f32.mrf.mxu0
        %v1765 = vadd.f32 0.0, %v1764
        %v1766 = vpop.f32.mrf.mxu0
        %v1767 = vadd.f32 0.0, %v1766
        %1768 = vmatmul.bf16.gmra.mxu0 %v1696
        %v1769 = vpop.f32.mrf.mxu0
        %v1770 = vadd.f32 0.0, %v1769
        %v1771 = vpop.f32.mrf.mxu0
        %v1772 = vadd.f32 0.0, %v1771
        %1773 = vmatmul.bf16.gmra.mxu0 %v1699
        %v1774 = vpop.f32.mrf.mxu0
        %v1775 = vadd.f32 0.0, %v1774
        %v1776 = vpop.f32.mrf.mxu0
        %v1777 = vadd.f32 0.0, %v1776
        %1778 = vmatmul.bf16.gmra.mxu0 %v1702
        %v1779 = vpop.f32.mrf.mxu0
        %v1780 = vadd.f32 0.0, %v1779
        %v1781 = vpop.f32.mrf.mxu0
        %v1782 = vadd.f32 0.0, %v1781
        %1783 = vmatmul.bf16.gmra.mxu0 %v1705
        %v1784 = vpop.f32.mrf.mxu0
        %v1785 = vadd.f32 0.0, %v1784
        %v1786 = vpop.f32.mrf.mxu0
        %v1787 = vadd.f32 0.0, %v1786
        %1788 = vmatmul.bf16.gmra.mxu0 %v1708
        %v1789 = vpop.f32.mrf.mxu0
        %v1790 = vadd.f32 0.0, %v1789
        %v1791 = vpop.f32.mrf.mxu0
        %v1792 = vadd.f32 0.0, %v1791
        %1793 = vmatmul.bf16.gmra.mxu0 %v1711
        %v1794 = vpop.f32.mrf.mxu0
        %v1795 = vadd.f32 0.0, %v1794
        %v1796 = vpop.f32.mrf.mxu0
        %v1797 = vadd.f32 0.0, %v1796
        %1798 = vmatmul.bf16.gmra.mxu0 %v1714
        %v1799 = vpop.f32.mrf.mxu0
        %v1800 = vadd.f32 0.0, %v1799
        %v1801 = vpop.f32.mrf.mxu0
        %v1802 = vadd.f32 0.0, %v1801
        %1803 = vmatmul.bf16.gmra.mxu0 %v1717
        %v1804 = vpop.f32.mrf.mxu0
        %v1805 = vadd.f32 0.0, %v1804
        %v1806 = vpop.f32.mrf.mxu0
        %v1807 = vadd.f32 0.0, %v1806
        %1808 = vmatmul.bf16.gmra.mxu0 %v1720
        %v1809 = vpop.f32.mrf.mxu0
        %v1810 = vadd.f32 0.0, %v1809
        %v1811 = vpop.f32.mrf.mxu0
        %v1812 = vadd.f32 0.0, %v1811
        %1813 = vdwg.mxu0
        %v1814 = vadd.f32 %v1592, %v1735
        %v1815 = vadd.f32 %v1593, %v1737
        %v1816 = vadd.f32 %v1594, %v1740
        %v1817 = vadd.f32 %v1595, %v1742
        %v1818 = vadd.f32 %v1596, %v1745
        %v1819 = vadd.f32 %v1597, %v1747
        %v1820 = vadd.f32 %v1598, %v1750
        %v1821 = vadd.f32 %v1599, %v1752
        %v1822 = vadd.f32 %v1600, %v1755
        %v1823 = vadd.f32 %v1601, %v1757
        %v1824 = vadd.f32 %v1602, %v1760
        %v1825 = vadd.f32 %v1603, %v1762
        %v1826 = vadd.f32 %v1604, %v1765
        %v1827 = vadd.f32 %v1605, %v1767
        %v1828 = vadd.f32 %v1606, %v1770
        %v1829 = vadd.f32 %v1607, %v1772
        %v1830 = vadd.f32 %v1608, %v1775
        %v1831 = vadd.f32 %v1609, %v1777
        %v1832 = vadd.f32 %v1610, %v1780
        %v1833 = vadd.f32 %v1611, %v1782
        %v1834 = vadd.f32 %v1612, %v1785
        %v1835 = vadd.f32 %v1613, %v1787
        %v1836 = vadd.f32 %v1614, %v1790
        %v1837 = vadd.f32 %v1615, %v1792
        %v1838 = vadd.f32 %v1616, %v1795
        %v1839 = vadd.f32 %v1617, %v1797
        %v1840 = vadd.f32 %v1618, %v1800
        %v1841 = vadd.f32 %v1619, %v1802
        %v1842 = vadd.f32 %v1620, %v1805
        %v1843 = vadd.f32 %v1621, %v1807
        %v1844 = vadd.f32 %v1622, %v1810
        %v1845 = vadd.f32 %v1623, %v1812
        %v1846 = vld [vmem:[%s1401 + $0x2] sm:$0xff]
        %v1847 = vld [vmem:[%s1401 + $0xa] sm:$0xff]
        %v1848 = vld [vmem:[%s1401 + $0x1a] sm:$0xff]
        %v1849 = vld [vmem:[%s1401 + $0x22] sm:$0xff]
        %v1850 = vld [vmem:[%s1401 + $0x32] sm:$0xff]
        %v1851 = vld [vmem:[%s1401 + $0x3a] sm:$0xff]
        %v1852 = vld [vmem:[%s1401 + $0x4a] sm:$0xff]
        %v1853 = vld [vmem:[%s1401 + $0x52] sm:$0xff]
        %v1854 = vld [vmem:[%s1401 + $0x62] sm:$0xff]
        %v1855 = vld [vmem:[%s1401 + $0x6a] sm:$0xff]
        %v1856 = vld [vmem:[%s1401 + $0x7a] sm:$0xff]
        %v1857 = vld [vmem:[%s1401 + $0x82] sm:$0xff]
        %v1858 = vld [vmem:[%s1401 + $0x92] sm:$0xff]
        %v1859 = vld [vmem:[%s1401 + $0x9a] sm:$0xff]
        %v1860 = vld [vmem:[%s1401 + $0xaa] sm:$0xff]
        %v1861 = vld [vmem:[%s1401 + $0xb2] sm:$0xff]
        %v1862 = vld [vmem:[%s1401 + $0xc2] sm:$0xff]
        %v1863 = vld [vmem:[%s1401 + $0xca] sm:$0xff]
        %v1864 = vld [vmem:[%s1401 + $0xda] sm:$0xff]
        %v1865 = vld [vmem:[%s1401 + $0xe2] sm:$0xff]
        %v1866 = vld [vmem:[%s1401 + $0xf2] sm:$0xff]
        %v1867 = vld [vmem:[%s1401 + $0xfa] sm:$0xff]
        %v1868 = vld [vmem:[%s1401 + $0x10a] sm:$0xff]
        %v1869 = vld [vmem:[%s1401 + $0x112] sm:$0xff]
        %v1870 = vld [vmem:[%s1401 + $0x122] sm:$0xff]
        %v1871 = vld [vmem:[%s1401 + $0x12a] sm:$0xff]
        %v1872 = vld [vmem:[%s1401 + $0x13a] sm:$0xff]
        %v1873 = vld [vmem:[%s1401 + $0x142] sm:$0xff]
        %v1874 = vld [vmem:[%s1401 + $0x152] sm:$0xff]
        %v1875 = vld [vmem:[%s1401 + $0x15a] sm:$0xff]
        %v1876 = vld [vmem:[%s1401 + $0x16a] sm:$0xff]
        %v1877 = vld [vmem:[%s1401 + $0x172] sm:$0xff]
        %v1878 = vpack.c.bf16 %v1847, %v1846
        %v1879 = vpack.c.bf16 %v1849, %v1848
        %v1880 = vpack.c.bf16 %v1851, %v1850
        %v1881 = vpack.c.bf16 %v1853, %v1852
        %v1882 = vpack.c.bf16 %v1855, %v1854
        %v1883 = vpack.c.bf16 %v1857, %v1856
        %v1884 = vpack.c.bf16 %v1859, %v1858
        %v1885 = vpack.c.bf16 %v1861, %v1860
        %v1886 = vpack.c.bf16 %v1863, %v1862
        %v1887 = vpack.c.bf16 %v1865, %v1864
        %v1888 = vpack.c.bf16 %v1867, %v1866
        %v1889 = vpack.c.bf16 %v1869, %v1868
        %v1890 = vpack.c.bf16 %v1871, %v1870
        %v1891 = vpack.c.bf16 %v1873, %v1872
        %v1892 = vpack.c.bf16 %v1875, %v1874
        %v1893 = vpack.c.bf16 %v1877, %v1876
        %s1894 = scalar_lea.vmem %s1, 16
        %v1895 = vld [vmem:[%s1894] sm:$0x3]
        %v1897 = vsel %vm230, %v1878, 0
        %v1900 = vsel %vm230, %v1879, 0
        %v1903 = vsel %vm230, %v1880, 0
        %v1906 = vsel %vm230, %v1881, 0
        %v1909 = vsel %vm230, %v1882, 0
        %v1912 = vsel %vm230, %v1883, 0
        %v1915 = vsel %vm230, %v1884, 0
        %v1918 = vsel %vm230, %v1885, 0
        %v1921 = vsel %vm230, %v1886, 0
        %v1924 = vsel %vm230, %v1887, 0
        %v1927 = vsel %vm230, %v1888, 0
        %v1930 = vsel %vm230, %v1889, 0
        %v1933 = vsel %vm230, %v1890, 0
        %v1936 = vsel %vm230, %v1891, 0
        %v1939 = vsel %vm230, %v1892, 0
        %v1942 = vsel %vm230, %v1893, 0
        %v1945 = vsel %vm279, %v1895, 0
        %1947 = vmatpush.bf16.msra.mxu0 0
        %1948 = vmatpush.bf16.msra.mxu0 0
        %1949 = vmatpush.bf16.msra.mxu0 0
        %1950 = vmatpush.bf16.msra.mxu0 0
        %1951 = vmatpush.bf16.msra.mxu0 0
        %1952 = vmatpush.bf16.msra.mxu0 0
        %1953 = vmatpush.bf16.msra.mxu0 0
        %1954 = vmatpush.bf16.msra.mxu0 %v1945
        %1955 = vmatmul.bf16.gmra.mxu0 %v1897
        %v1956 = vpop.f32.mrf.mxu0
        %v1957 = vadd.f32 0.0, %v1956
        %v1958 = vpop.f32.mrf.mxu0
        %v1959 = vadd.f32 0.0, %v1958
        %1960 = vmatmul.bf16.gmra.mxu0 %v1900
        %v1961 = vpop.f32.mrf.mxu0
        %v1962 = vadd.f32 0.0, %v1961
        %v1963 = vpop.f32.mrf.mxu0
        %v1964 = vadd.f32 0.0, %v1963
        %1965 = vmatmul.bf16.gmra.mxu0 %v1903
        %v1966 = vpop.f32.mrf.mxu0
        %v1967 = vadd.f32 0.0, %v1966
        %v1968 = vpop.f32.mrf.mxu0
        %v1969 = vadd.f32 0.0, %v1968
        %1970 = vmatmul.bf16.gmra.mxu0 %v1906
        %v1971 = vpop.f32.mrf.mxu0
        %v1972 = vadd.f32 0.0, %v1971
        %v1973 = vpop.f32.mrf.mxu0
        %v1974 = vadd.f32 0.0, %v1973
        %1975 = vmatmul.bf16.gmra.mxu0 %v1909
        %v1976 = vpop.f32.mrf.mxu0
        %v1977 = vadd.f32 0.0, %v1976
        %v1978 = vpop.f32.mrf.mxu0
        %v1979 = vadd.f32 0.0, %v1978
        %1980 = vmatmul.bf16.gmra.mxu0 %v1912
        %v1981 = vpop.f32.mrf.mxu0
        %v1982 = vadd.f32 0.0, %v1981
        %v1983 = vpop.f32.mrf.mxu0
        %v1984 = vadd.f32 0.0, %v1983
        %1985 = vmatmul.bf16.gmra.mxu0 %v1915
        %v1986 = vpop.f32.mrf.mxu0
        %v1987 = vadd.f32 0.0, %v1986
        %v1988 = vpop.f32.mrf.mxu0
        %v1989 = vadd.f32 0.0, %v1988
        %1990 = vmatmul.bf16.gmra.mxu0 %v1918
        %v1991 = vpop.f32.mrf.mxu0
        %v1992 = vadd.f32 0.0, %v1991
        %v1993 = vpop.f32.mrf.mxu0
        %v1994 = vadd.f32 0.0, %v1993
        %1995 = vmatmul.bf16.gmra.mxu0 %v1921
        %v1996 = vpop.f32.mrf.mxu0
        %v1997 = vadd.f32 0.0, %v1996
        %v1998 = vpop.f32.mrf.mxu0
        %v1999 = vadd.f32 0.0, %v1998
        %2000 = vmatmul.bf16.gmra.mxu0 %v1924
        %v2001 = vpop.f32.mrf.mxu0
        %v2002 = vadd.f32 0.0, %v2001
        %v2003 = vpop.f32.mrf.mxu0
        %v2004 = vadd.f32 0.0, %v2003
        %2005 = vmatmul.bf16.gmra.mxu0 %v1927
        %v2006 = vpop.f32.mrf.mxu0
        %v2007 = vadd.f32 0.0, %v2006
        %v2008 = vpop.f32.mrf.mxu0
        %v2009 = vadd.f32 0.0, %v2008
        %2010 = vmatmul.bf16.gmra.mxu0 %v1930
        %v2011 = vpop.f32.mrf.mxu0
        %v2012 = vadd.f32 0.0, %v2011
        %v2013 = vpop.f32.mrf.mxu0
        %v2014 = vadd.f32 0.0, %v2013
        %2015 = vmatmul.bf16.gmra.mxu0 %v1933
        %v2016 = vpop.f32.mrf.mxu0
        %v2017 = vadd.f32 0.0, %v2016
        %v2018 = vpop.f32.mrf.mxu0
        %v2019 = vadd.f32 0.0, %v2018
        %2020 = vmatmul.bf16.gmra.mxu0 %v1936
        %v2021 = vpop.f32.mrf.mxu0
        %v2022 = vadd.f32 0.0, %v2021
        %v2023 = vpop.f32.mrf.mxu0
        %v2024 = vadd.f32 0.0, %v2023
        %2025 = vmatmul.bf16.gmra.mxu0 %v1939
        %v2026 = vpop.f32.mrf.mxu0
        %v2027 = vadd.f32 0.0, %v2026
        %v2028 = vpop.f32.mrf.mxu0
        %v2029 = vadd.f32 0.0, %v2028
        %2030 = vmatmul.bf16.gmra.mxu0 %v1942
        %v2031 = vpop.f32.mrf.mxu0
        %v2032 = vadd.f32 0.0, %v2031
        %v2033 = vpop.f32.mrf.mxu0
        %v2034 = vadd.f32 0.0, %v2033
        %2035 = vdwg.mxu0
        %v2036 = vadd.f32 %v1814, %v1957
        %v2037 = vadd.f32 %v1815, %v1959
        %v2038 = vadd.f32 %v1816, %v1962
        %v2039 = vadd.f32 %v1817, %v1964
        %v2040 = vadd.f32 %v1818, %v1967
        %v2041 = vadd.f32 %v1819, %v1969
        %v2042 = vadd.f32 %v1820, %v1972
        %v2043 = vadd.f32 %v1821, %v1974
        %v2044 = vadd.f32 %v1822, %v1977
        %v2045 = vadd.f32 %v1823, %v1979
        %v2046 = vadd.f32 %v1824, %v1982
        %v2047 = vadd.f32 %v1825, %v1984
        %v2048 = vadd.f32 %v1826, %v1987
        %v2049 = vadd.f32 %v1827, %v1989
        %v2050 = vadd.f32 %v1828, %v1992
        %v2051 = vadd.f32 %v1829, %v1994
        %v2052 = vadd.f32 %v1830, %v1997
        %v2053 = vadd.f32 %v1831, %v1999
        %v2054 = vadd.f32 %v1832, %v2002
        %v2055 = vadd.f32 %v1833, %v2004
        %v2056 = vadd.f32 %v1834, %v2007
        %v2057 = vadd.f32 %v1835, %v2009
        %v2058 = vadd.f32 %v1836, %v2012
        %v2059 = vadd.f32 %v1837, %v2014
        %v2060 = vadd.f32 %v1838, %v2017
        %v2061 = vadd.f32 %v1839, %v2019
        %v2062 = vadd.f32 %v1840, %v2022
        %v2063 = vadd.f32 %v1841, %v2024
        %v2064 = vadd.f32 %v1842, %v2027
        %v2065 = vadd.f32 %v1843, %v2029
        %v2066 = vadd.f32 %v1844, %v2032
        %v2067 = vadd.f32 %v1845, %v2034
        %v2068 = vadd.f32 %v2036, %v2037
        %v2069 = vadd.f32 %v2068, %v2038
        %v2070 = vadd.f32 %v2069, %v2039
        %v2071 = vadd.f32 %v2070, %v2040
        %v2072 = vadd.f32 %v2071, %v2041
        %v2073 = vadd.f32 %v2072, %v2042
        %v2074 = vadd.f32 %v2073, %v2043
        %v2075 = vadd.f32 %v2074, %v2044
        %v2076 = vadd.f32 %v2075, %v2045
        %v2077 = vadd.f32 %v2076, %v2046
        %v2078 = vadd.f32 %v2077, %v2047
        %v2079 = vadd.f32 %v2078, %v2048
        %v2080 = vadd.f32 %v2079, %v2049
        %v2081 = vadd.f32 %v2080, %v2050
        %v2082 = vadd.f32 %v2081, %v2051
        %v2083 = vadd.f32 %v2082, %v2052
        %v2084 = vadd.f32 %v2083, %v2053
        %v2085 = vadd.f32 %v2084, %v2054
        %v2086 = vadd.f32 %v2085, %v2055
        %v2087 = vadd.f32 %v2086, %v2056
        %v2088 = vadd.f32 %v2087, %v2057
        %v2089 = vadd.f32 %v2088, %v2058
        %v2090 = vadd.f32 %v2089, %v2059
        %v2091 = vadd.f32 %v2090, %v2060
        %v2092 = vadd.f32 %v2091, %v2061
        %v2093 = vadd.f32 %v2092, %v2062
        %v2094 = vadd.f32 %v2093, %v2063
        %v2095 = vadd.f32 %v2094, %v2064
        %v2096 = vadd.f32 %v2095, %v2065
        %v2097 = vadd.f32 %v2096, %v2066
        %v2098 = vadd.f32 %v2097, %v2067
        %v2099 = vrot.slane %v2098, 4
        %v2100 = vadd.f32 %v2098, %v2099
        %v2101 = vrot.slane %v2100, 2
        %v2102 = vadd.f32 %v2100, %v2101
        %v2103 = vrot.slane %v2102, 1
        %v2104 = vadd.f32 %v2102, %v2103
        %v2105 = vrcp.pop 256.0
        %v2106 = vmul.f32 256.0, %v2105
        %v2107 = vsub.f32 1.0, %v2106
        %v2108 = vmul.f32 %v2105, %v2107
        %v2109 = vadd.f32 %v2105, %v2108
        %vm2110 = vweird.f32 %v2105
        %v2111 = vsel %vm2110, %v2105, %v2109
        %v2112 = vmul.f32 %v2104, %v2111
        %v2113 = vsub.f32 %v2036, %v2112
        %v2114 = vsub.f32 %v2037, %v2112
        %v2115 = vsub.f32 %v2038, %v2112
        %v2116 = vsub.f32 %v2039, %v2112
        %v2117 = vsub.f32 %v2040, %v2112
        %v2118 = vsub.f32 %v2041, %v2112
        %v2119 = vsub.f32 %v2042, %v2112
        %v2120 = vsub.f32 %v2043, %v2112
        %v2121 = vsub.f32 %v2044, %v2112
        %v2122 = vsub.f32 %v2045, %v2112
        %v2123 = vsub.f32 %v2046, %v2112
        %v2124 = vsub.f32 %v2047, %v2112
        %v2125 = vsub.f32 %v2048, %v2112
        %v2126 = vsub.f32 %v2049, %v2112
        %v2127 = vsub.f32 %v2050, %v2112
        %v2128 = vsub.f32 %v2051, %v2112
        %v2129 = vsub.f32 %v2052, %v2112
        %v2130 = vsub.f32 %v2053, %v2112
        %v2131 = vsub.f32 %v2054, %v2112
        %v2132 = vsub.f32 %v2055, %v2112
        %v2133 = vsub.f32 %v2056, %v2112
        %v2134 = vsub.f32 %v2057, %v2112
        %v2135 = vsub.f32 %v2058, %v2112
        %v2136 = vsub.f32 %v2059, %v2112
        %v2137 = vsub.f32 %v2060, %v2112
        %v2138 = vsub.f32 %v2061, %v2112
        %v2139 = vsub.f32 %v2062, %v2112
        %v2140 = vsub.f32 %v2063, %v2112
        %v2141 = vsub.f32 %v2064, %v2112
        %v2142 = vsub.f32 %v2065, %v2112
        %v2143 = vsub.f32 %v2066, %v2112
        %v2144 = vsub.f32 %v2067, %v2112
        %v2145 = vmul.f32 %v2113, %v2113
        %v2146 = vmul.f32 %v2114, %v2114
        %v2147 = vmul.f32 %v2115, %v2115
        %v2148 = vmul.f32 %v2116, %v2116
        %v2149 = vmul.f32 %v2117, %v2117
        %v2150 = vmul.f32 %v2118, %v2118
        %v2151 = vmul.f32 %v2119, %v2119
        %v2152 = vmul.f32 %v2120, %v2120
        %v2153 = vmul.f32 %v2121, %v2121
        %v2154 = vmul.f32 %v2122, %v2122
        %v2155 = vmul.f32 %v2123, %v2123
        %v2156 = vmul.f32 %v2124, %v2124
        %v2157 = vmul.f32 %v2125, %v2125
        %v2158 = vmul.f32 %v2126, %v2126
        %v2159 = vmul.f32 %v2127, %v2127
        %v2160 = vmul.f32 %v2128, %v2128
        %v2161 = vmul.f32 %v2129, %v2129
        %v2162 = vmul.f32 %v2130, %v2130
        %v2163 = vmul.f32 %v2131, %v2131
        %v2164 = vmul.f32 %v2132, %v2132
        %v2165 = vmul.f32 %v2133, %v2133
        %v2166 = vmul.f32 %v2134, %v2134
        %v2167 = vmul.f32 %v2135, %v2135
        %v2168 = vmul.f32 %v2136, %v2136
        %v2169 = vmul.f32 %v2137, %v2137
        %v2170 = vmul.f32 %v2138, %v2138
        %v2171 = vmul.f32 %v2139, %v2139
        %v2172 = vmul.f32 %v2140, %v2140
        %v2173 = vmul.f32 %v2141, %v2141
        %v2174 = vmul.f32 %v2142, %v2142
        %v2175 = vmul.f32 %v2143, %v2143
        %v2176 = vmul.f32 %v2144, %v2144
        %v2177 = vadd.f32 %v2145, %v2146
        %v2178 = vadd.f32 %v2177, %v2147
        %v2179 = vadd.f32 %v2178, %v2148
        %v2180 = vadd.f32 %v2179, %v2149
        %v2181 = vadd.f32 %v2180, %v2150
        %v2182 = vadd.f32 %v2181, %v2151
        %v2183 = vadd.f32 %v2182, %v2152
        %v2184 = vadd.f32 %v2183, %v2153
        %v2185 = vadd.f32 %v2184, %v2154
        %v2186 = vadd.f32 %v2185, %v2155
        %v2187 = vadd.f32 %v2186, %v2156
        %v2188 = vadd.f32 %v2187, %v2157
        %v2189 = vadd.f32 %v2188, %v2158
        %v2190 = vadd.f32 %v2189, %v2159
        %v2191 = vadd.f32 %v2190, %v2160
        %v2192 = vadd.f32 %v2191, %v2161
        %v2193 = vadd.f32 %v2192, %v2162
        %v2194 = vadd.f32 %v2193, %v2163
        %v2195 = vadd.f32 %v2194, %v2164
        %v2196 = vadd.f32 %v2195, %v2165
        %v2197 = vadd.f32 %v2196, %v2166
        %v2198 = vadd.f32 %v2197, %v2167
        %v2199 = vadd.f32 %v2198, %v2168
        %v2200 = vadd.f32 %v2199, %v2169
        %v2201 = vadd.f32 %v2200, %v2170
        %v2202 = vadd.f32 %v2201, %v2171
        %v2203 = vadd.f32 %v2202, %v2172
        %v2204 = vadd.f32 %v2203, %v2173
        %v2205 = vadd.f32 %v2204, %v2174
        %v2206 = vadd.f32 %v2205, %v2175
        %v2207 = vadd.f32 %v2206, %v2176
        %v2208 = vrot.slane %v2207, 4
        %v2209 = vadd.f32 %v2207, %v2208
        %v2210 = vrot.slane %v2209, 2
        %v2211 = vadd.f32 %v2209, %v2210
        %v2212 = vrot.slane %v2211, 1
        %v2213 = vadd.f32 %v2211, %v2212
        %p2214 = scmp.eq.s32.totalorder %s14, 0
        // Predicated region
        $region29: #{tpu_custom_call.1} parent=27 // pred_check
          %p2215 = pneg %p2214
        $region30: #{tpu_custom_call.1} parent=27 // pred_check_branch
          %2217 = sbr.rel (%p2215) target = $region32
        $region31: #{tpu_custom_call.1} parent=27 // pred_region
          %2218 = vst [vmem:[#allocation2] sm:$0x1] %v2112
          %2219 = vst [vmem:[#allocation2 + $0x1] sm:$0x1] %v2213
        $region32: #{tpu_custom_call.1} parent=27 // pred_fallthru
          _
        %p2220 = scmp.gt.s32.totalorder %s14, 0
        // Predicated region
        $region33: #{tpu_custom_call.1} parent=27 // pred_check
          %p2221 = pneg %p2220
        $region34: #{tpu_custom_call.1} parent=27 // pred_check_branch
          %2223 = sbr.rel (%p2221) target = $region36
        $region35: #{tpu_custom_call.1} parent=27 // pred_region
          %s2224 = scvt.s32.f32 %s14
          %s2225 = smul.f32 %s2224, 256.0
          %v2226 = vld [vmem:[#allocation2] sm:$0x1]
          %v2227 = vld [vmem:[#allocation2 + $0x1] sm:$0x1]
          %s2228 = sadd.f32 %s2225, 256.0
          %v2229 = vsub.f32 %v2112, %v2226
          %v2230 = vstv %s2228
          %v2231 = vrcp.pop %v2230
          %v2232 = vmul.f32 %v2230, %v2231
          %v2233 = vsub.f32 1.0, %v2232
          %v2234 = vmul.f32 %v2231, %v2233
          %v2235 = vadd.f32 %v2231, %v2234
          %vm2236 = vweird.f32 %v2230
          %vm2237 = vweird.f32 %v2231
          %vm2238 = vmor %vm2236, %vm2237
          %v2239 = vsel %vm2238, %v2231, %v2235
          %v2240 = vand.u32 2147483647, %v2230
          %vm2241 = vcmp.eq.f32.partialorder %v2240, 8.507059e+37
          %v2242 = vand.u32 %v2230, 2147483648
          %v2243 = vor.u32 1.1754944e-38, %v2242
          %v2244 = vsel %vm2241, %v2243, %v2239
          %s2245 = vtos %v2244
          %s2246 = smul.f32 256.0, %s2245
          %v2247 = vstv %s2246
          %v2248 = vmul.f32 %v2229, %v2247
          %v2249 = vadd.f32 %v2226, %v2248
          %v2250 = vadd.f32 %v2227, %v2213
          %v2251 = vmul.f32 %v2229, %v2229
          %s2252 = smul.f32 %s2225, 256.0
          %v2253 = vstv %s2228
          %v2254 = vrcp.pop %v2253
          %v2255 = vmul.f32 %v2253, %v2254
          %v2256 = vsub.f32 1.0, %v2255
          %v2257 = vmul.f32 %v2254, %v2256
          %v2258 = vadd.f32 %v2254, %v2257
          %vm2259 = vweird.f32 %v2253
          %vm2260 = vweird.f32 %v2254
          %vm2261 = vmor %vm2259, %vm2260
          %v2262 = vsel %vm2261, %v2254, %v2258
          %v2263 = vand.u32 2147483647, %v2253
          %vm2264 = vcmp.eq.f32.partialorder %v2263, 8.507059e+37
          %v2265 = vand.u32 %v2253, 2147483648
          %v2266 = vor.u32 1.1754944e-38, %v2265
          %v2267 = vsel %vm2264, %v2266, %v2262
          %s2268 = vtos %v2267
          %s2269 = smul.f32 %s2252, %s2268
          %v2270 = vstv %s2269
          %v2271 = vmul.f32 %v2251, %v2270
          %v2272 = vadd.f32 %v2250, %v2271
          %2273 = vst [vmem:[#allocation2] sm:$0x1] %v2249
          %2274 = vst [vmem:[#allocation2 + $0x1] sm:$0x1] %v2272
        $region36: #{tpu_custom_call.1} parent=27 // pred_fallthru
          _
        // Predicated region
        $region37: #{tpu_custom_call.1} parent=27 // pred_check
          %p2275 = pneg %p74
        $region38: #{tpu_custom_call.1} parent=27 // pred_check_branch
          %2277 = sbr.rel (%p2275) target = $region40
        $region39: #{tpu_custom_call.1} parent=27 // pred_region
          %2279 = vsyncadd [#allocation3], 0
          %s2281 = sshll.u32 [#allocation2], 4
          %s2282 = int_to_ptr.vmem [resolvable:$true] %s2281
          %s2283 = sshll.u32 %s2, 4
          %s2284 = int_to_ptr.hbm [resolvable:$true] %s2283
          %2286 = dma.vmem_to_hbm [thread:$0]  %s2282, 32, %s2284, [#allocation3]
        $region40: #{tpu_custom_call.1} parent=27 // pred_fallthru
          _
        // Predicated region
        $region41: #{tpu_custom_call.1} parent=27 // pred_check
          %p2287 = pneg %p74
        $region42: #{tpu_custom_call.1} parent=27 // pred_check_branch
          %2289 = sbr.rel (%p2287) target = $region44
        $region43: #{tpu_custom_call.1} parent=27 // pred_region
          %2291 = dma.done [#allocation3], 32
        $region44: #{tpu_custom_call.1} parent=27 // pred_fallthru
          _
      $region28: #{tpu_custom_call.1} parent=5 // pred_fallthru
        _
      %p2292 = scmp.le.s32.totalorder 2, %s9
      // Predicated region
      $region45: #{tpu_custom_call.1} parent=5 // pred_check
        %p2293 = pneg %p2292
      $region46: #{tpu_custom_call.1} parent=5 // pred_check_branch
        %2295 = sbr.rel (%p2293) target = $region48
      $region47: #{tpu_custom_call.1} parent=5 // pred_region
        %s2296 = ssub.s32 %s9, 2
      $region48: #{tpu_custom_call.1} parent=5 // pred_fallthru
        _
    $region6: #{tpu_custom_call.1} parent=1 // loop_footer
      %s13 = sadd.s32 1, %s9
    $region7: #{tpu_custom_call.1} parent=1 // loop_footer_branch
      %8 = sbr.rel target = $region3
    $region8: #{tpu_custom_call.1} parent=1 // loop_exit
      _
    %2297 = vsyncpa [#allocation3], 1
    %s2298 = scalar_lea.sflag [#allocation3], 1
    %2299 = vsyncpa %s2298, 1

</llo_original>
